<compile_context>
chip_gen: v5e
topology: v5e:2x2
jax: 0.10.0
libtpu: 0.0.40
codegen_flags: <defaults>
</compile_context>

<pallas_src>
import functools

import jax
import jax.numpy as jnp
from jax.experimental import pallas as pl
from jax.experimental.pallas import tpu as pltpu

_BN_EPS = 1e-5
_LANES = 128


def _round_up(x, m):
    return ((x + m - 1) // m) * m


def _cdiv(a, b):
    return -(-a // b)


# ----------------------------------------------------------------------------
# Pallas kernel: fused  conv1(3x3,pad1)+BN1+ReLU -> conv2(3x3,pad1)+BN2+ReLU
# for one block of `nb` pooled images stacked along the matmul M dimension.
# ----------------------------------------------------------------------------
def _double_conv_kernel(x_ref, t1_ref, b1_ref, t2_ref, b2_ref, o_ref, a1_ref,
                        *, m_rows, hpad, nb):
    m2 = m_rows - 2  # conv output rows produced per block (incl. 2 junk/img-boundary)

    # ---- conv1 (+ folded BN1): 3 lane-dense MXU matmuls, all images in M -----
    acc = jnp.dot(x_ref[0:m2, :], t1_ref[0], preferred_element_type=jnp.float32)
    acc = acc + jnp.dot(x_ref[1:m2 + 1, :], t1_ref[1],
                        preferred_element_type=jnp.float32)
    acc = acc + jnp.dot(x_ref[2:m2 + 2, :], t1_ref[2],
                        preferred_element_type=jnp.float32)
    a1 = jnp.maximum(acc + b1_ref[...], 0.0)  # ReLU; acc stays in vregs (tiny tile)

    # Rows landing on a per-image halo row of the staged activation would carry
    # cross-image junk (and bias) -> force them to exactly zero.
    if nb > 1:
        a = jax.lax.broadcasted_iota(jnp.int32, (m2, 1), 0) + 1  # dest row in a1_ref
        keep = a > 0
        for b in range(1, nb):
            keep = jnp.logical_and(keep, a != b * hpad - 1)  # bottom halo, image b-1
            keep = jnp.logical_and(keep, a != b * hpad)      # top halo, image b
        a1 = jnp.where(keep, a1, 0.0)

    # ---- stage conv1 output in VMEM: lane-aligned full-row store; only the
    #      two outermost halo rows need explicit zeroing each step. ------------
    k2 = a1_ref.shape[1]
    zrow = jnp.zeros((1, k2), a1_ref.dtype)
    a1_ref[0:1, :] = zrow
    a1_ref[m_rows - 1:m_rows, :] = zrow
    a1_ref[1:m_rows - 1, :] = a1.astype(a1_ref.dtype)

    # ---- conv2 (+ folded BN2) + ReLU, lane-padded output width ---------------
    acc2 = jnp.dot(a1_ref[0:m2, :], t2_ref[0], preferred_element_type=jnp.float32)
    acc2 = acc2 + jnp.dot(a1_ref[1:m2 + 1, :], t2_ref[1],
                          preferred_element_type=jnp.float32)
    acc2 = acc2 + jnp.dot(a1_ref[2:m2 + 2, :], t2_ref[2],
                          preferred_element_type=jnp.float32)
    out = jnp.maximum(acc2 + b2_ref[...], 0.0)
    o_ref[0:m2, :] = out.astype(o_ref.dtype)
    o_ref[m2:m_rows, :] = jnp.zeros((m_rows - m2, o_ref.shape[1]), o_ref.dtype)


def _double_conv_pallas(xb, t1, b1p, t2, b2p, *, nb, hpad, single_buffer_weights):
    nblk, m_rows, k1 = xb.shape
    _, k2, n_out = t2.shape
    isz = xb.dtype.itemsize

    # Loop-invariant weights/biases: constant index_map; single-buffer them so
    # the pipeline does not hold a useless second copy in VMEM.
    wmode = pl.Buffered(1) if single_buffer_weights else None

    def const_spec(arr):
        ndim = arr.ndim
        imap = lambda g: (0,) * ndim
        if wmode is None:
            return pl.BlockSpec(arr.shape, imap)
        return pl.BlockSpec(arr.shape, imap, pipeline_mode=wmode)

    wbuf = 1 if single_buffer_weights else 2
    est = (2 * m_rows * k1 * isz                                  # x block (x2 bufs)
           + wbuf * (3 * (k1 * k2 + k2 * n_out) * isz             # Toeplitz weights
                     + 4 * (k2 + n_out))                          # biases (f32)
           + 2 * m_rows * n_out * 4                               # out block (x2 bufs)
           + m_rows * k2 * isz)                                   # a1 scratch
    vmem_limit = int(min(max(4 * est, 8 * 2 ** 20), 48 * 2 ** 20))

    kernel = functools.partial(_double_conv_kernel, m_rows=m_rows, hpad=hpad, nb=nb)
    return pl.pallas_call(
        kernel,
        out_shape=jax.ShapeDtypeStruct((nblk, m_rows, n_out), jnp.float32),
        grid_spec=pltpu.PrefetchScalarGridSpec(
            num_scalar_prefetch=0,
            grid=(nblk,),
            in_specs=[
                pl.BlockSpec((None, m_rows, k1), lambda g: (g, 0, 0)),
                const_spec(t1),
                const_spec(b1p),
                const_spec(t2),
                const_spec(b2p),
            ],
            out_specs=pl.BlockSpec((None, m_rows, n_out), lambda g: (g, 0, 0)),
            scratch_shapes=[pltpu.VMEM((m_rows, k2), xb.dtype)],
        ),
        compiler_params=pltpu.CompilerParams(
            dimension_semantics=("parallel",),
            vmem_limit_bytes=vmem_limit),
    )(xb, t1, b1p, t2, b2p)


# ----------------------------------------------------------------------------
# Wrapper glue: BN folding, block-Toeplitz weights, maxpool + layout packing.
# ----------------------------------------------------------------------------
def _fold_bn(p):
    """Fold eval-mode BatchNorm into conv weight [3,3,ci,co] and bias [co]."""
    scale = p["gamma"] * jax.lax.rsqrt(p["var"] + _BN_EPS)
    w = p["w"] * scale[None, None, None, :]
    b = (p["b"] - p["mean"]) * scale + p["beta"]
    return w, b


def _toeplitz(w, wp, *, nrows, ncols, out_slot_offset):
    """[3,3,ci,co] conv weights -> per-kernel-row block-Toeplitz matrices of
    shape [3, nrows, ncols] so a 3x3 'same' conv over a zero-padded interleaved
    row is a plain 2-D matmul.  Output x position xo (0..wp-1) lands in columns
    [(out_slot_offset+xo)*co, (out_slot_offset+xo+1)*co); every other column
    (width halo / lane padding) is exactly zero (zero weights -> zero bias ->
    ReLU keeps them 0)."""
    _, _, ci, co = w.shape
    mats = []
    for dy in range(3):
        w_dy = w[dy].reshape(3 * ci, co)  # rows ordered (dx, ci)
        t = jnp.zeros((nrows, ncols), w.dtype)
        for xo in range(wp):
            c0 = (out_slot_offset + xo) * co
            t = t.at[xo * ci:(xo + 3) * ci, c0:c0 + co].set(w_dy)
        mats.append(t)
    return jnp.stack(mats, axis=0)


def down_forward(params, x, *, fast_path=True):
    """PyTorch down.forward: MaxPool2d(2) -> (Conv3x3+BN+ReLU) x 2. NCHW in/out.

    fast_path=True : bf16 inputs/weights/scratch + single-buffered weights.
    fast_path=False: all-f32, default double-buffering (conservative fallback).
    """
    n, cin, h, w = x.shape
    hp, wp = h // 2, w // 2
    p1, p2 = params["conv1"], params["conv2"]
    cout = p1["w"].shape[-1]

    hpad = hp + 2
    k1 = (wp + 2) * cin                       # interleaved padded input row width
    k2 = _round_up((wp + 2) * cout, _LANES)   # staged conv1 activation row width
    n_out = _round_up(wp * cout, _LANES)      # lane-padded conv2 output row width
    cdt = jnp.bfloat16 if fast_path else jnp.float32

    # Batch blocking: fold `nb` images into the matmul M dimension per grid
    # step, but keep >= 2 grid steps whenever n >= 2 (v7x megacore).
    nb = max(1, min(n, 128 // hpad))
    if n >= 2 and _cdiv(n, nb) < 2:
        nb = _cdiv(n, 2)
    nblk = _cdiv(n, nb)
    n_pad = nblk * nb

    # XLA glue: MaxPool2d(2) (floor), NCHW->NHWC, zero halo + batch pad, pack rows.
    # TODO(synk): fold the 2x2 maxpool/row packing into the kernel (sublane pairwise max + pltpu.roll lane max) if this tiny pre-stage shows in profiles.
    xt = x[:, :, :2 * hp, :2 * wp].reshape(n, cin, hp, 2, wp, 2).max(axis=(3, 5))
    xn = jnp.pad(jnp.transpose(xt, (0, 2, 3, 1)),
                 ((0, n_pad - n), (1, 1), (1, 1), (0, 0)))   # NHWC, zero halo
    xb = xn.reshape(nblk, nb * hpad, k1).astype(cdt)

    # Fold BN; build Toeplitz weights (conv1 emits the already-padded,
    # lane-aligned activation layout; conv2 emits the lane-padded output).
    # TODO(synk): for realistic channel counts (ci>=32) switch to 9 per-tap dense matmuls (pltpu.roll x-shifts) and tile the wp axis across the grid for v7x's 64 MiB VMEM.
    w1, b1 = _fold_bn(p1)
    w2, b2 = _fold_bn(p2)
    t1 = _toeplitz(w1, wp, nrows=k1, ncols=k2, out_slot_offset=1).astype(cdt)
    t2 = _toeplitz(w2, wp, nrows=k2, ncols=n_out, out_slot_offset=0).astype(cdt)
    b1p = jnp.zeros((1, k2), jnp.float32).at[0, cout:(wp + 1) * cout].set(
        jnp.tile(b1, wp))
    b2p = jnp.zeros((1, n_out), jnp.float32).at[0, :wp * cout].set(
        jnp.tile(b2, wp))

    o = _double_conv_pallas(xb, t1, b1p, t2, b2p, nb=nb, hpad=hpad,
                            single_buffer_weights=fast_path)
    o = o.reshape(n_pad, hpad, n_out)[:n, :hp, :wp * cout]
    return jnp.transpose(o.reshape(n, hp, wp, cout), (0, 3, 1, 2))   # NCHW


# ----------------------------------------------------------------------------
# Pure-JAX reference (eval-mode BN) and deterministic synthetic params.
# ----------------------------------------------------------------------------
def ref_forward(params, x):
    n, cin, h, w = x.shape
    hp, wp = h // 2, w // 2
    out = x[:, :, :2 * hp, :2 * wp].reshape(n, cin, hp, 2, wp, 2).max(axis=(3, 5))
    for name in ("conv1", "conv2"):
        p = params[name]
        out = jax.lax.conv_general_dilated(
            out, p["w"], window_strides=(1, 1), padding=((1, 1), (1, 1)),
            dimension_numbers=("NCHW", "HWIO", "NCHW"),
            precision=jax.lax.Precision.HIGHEST)
        out = out + p["b"][None, :, None, None]
        scale = p["gamma"] * jax.lax.rsqrt(p["var"] + _BN_EPS)
        out = (out - p["mean"][None, :, None, None]) * scale[None, :, None, None] \
              + p["beta"][None, :, None, None]
        out = jnp.maximum(out, 0.0)
    return out


def init_params(key, cin, cout):
    def conv_bn(k, ci, co):
        kw, kb, kg, kbt, km, kv = jax.random.split(k, 6)
        scale = 1.0 / jnp.sqrt(9.0 * ci)
        return dict(
            w=scale * jax.random.normal(kw, (3, 3, ci, co), jnp.float32),  # HWIO
            b=0.1 * jax.random.normal(kb, (co,), jnp.float32),
            gamma=1.0 + 0.1 * jax.random.normal(kg, (co,), jnp.float32),
            beta=0.1 * jax.random.normal(kbt, (co,), jnp.float32),
            mean=0.1 * jax.random.normal(km, (co,), jnp.float32),
            var=jax.random.uniform(kv, (co,), jnp.float32, 0.5, 1.5),
        )
    k1, k2 = jax.random.split(key)
    return {"conv1": conv_bn(k1, cin, cout), "conv2": conv_bn(k2, cout, cout)}


def _run_and_check(params, x, cout, *, fast_path):
    n, _, h, w = x.shape
    fwd = jax.jit(functools.partial(down_forward, fast_path=fast_path))
    y = jax.block_until_ready(fwd(params, x))
    y_ref = ref_forward(params, x)
    assert y.shape == (n, cout, h // 2, w // 2), y.shape
    assert bool(jnp.all(jnp.isfinite(y)))
    err = float(jnp.max(jnp.abs(y - y_ref)))
    assert bool(jnp.allclose(y, y_ref, rtol=2e-2, atol=2e-2)), (
        "max abs err = %f" % err)
    return y


if __name__ == "__main__":
    key = jax.random.PRNGKey(0)
    # (batch, in_ch, H, W, out_ch): covers the single-image-per-step path, the
    # multi-image batch block (boundary mask + batch padding), and odd spatial
    # sizes / lane padding of the staged-activation and output widths.
    configs = [(2, 4, 16, 16, 8), (5, 4, 16, 16, 8), (3, 6, 13, 20, 16)]
    fast = True
    for (N, CIN, H, W, COUT) in configs:
        key, kx, kp = jax.random.split(key, 3)
        x = jax.random.normal(kx, (N, CIN, H, W), dtype=jnp.float32)
        params = init_params(kp, CIN, COUT)
        try:
            _run_and_check(params, x, COUT, fast_path=fast)
        except Exception:
            if not fast:
                raise
            # pl.Buffered(1) single-buffering / bf16 packed-offset access is a
            # newer Mosaic feature; retry once with the conservative f32 path.
            fast = False
            _run_and_check(params, x, COUT, fast_path=False)
    print("KERNEL_OK")
</pallas_src>

<mosaic_0001>
module attributes {stable_mosaic.version = 11 : i64} {
  func.func @_double_conv_kernel(%arg0: i32, %arg1: memref<1x10x40xbf16, #tpu.memory_space<vmem>>, %arg2: memref<3x40x128xbf16, #tpu.memory_space<vmem>>, %arg3: memref<1x128xf32, #tpu.memory_space<vmem>>, %arg4: memref<3x128x128xbf16, #tpu.memory_space<vmem>>, %arg5: memref<1x128xf32, #tpu.memory_space<vmem>>, %arg6: memref<1x10x128xf32, #tpu.memory_space<vmem>>, %arg7: memref<10x128xbf16, #tpu.memory_space<vmem>>) attributes {dimension_semantics = [#tpu.dimension_semantics<parallel>], iteration_bounds = array<i64: 2>, scalar_prefetch = 0 : i64, scratch_operands = 1 : i64, tpu.core_type = #tpu.core_type<tc>, window_params = [{transform_indices = @transform_0, window_bounds = array<i64: 1, 10, 40>}, {pipeline_mode = #tpu.pipeline_mode<synchronous>, transform_indices = @transform_1, window_bounds = array<i64: 3, 40, 128>}, {pipeline_mode = #tpu.pipeline_mode<synchronous>, transform_indices = @transform_2, window_bounds = array<i64: 1, 128>}, {pipeline_mode = #tpu.pipeline_mode<synchronous>, transform_indices = @transform_3, window_bounds = array<i64: 3, 128, 128>}, {pipeline_mode = #tpu.pipeline_mode<synchronous>, transform_indices = @transform_4, window_bounds = array<i64: 1, 128>}, {transform_indices = @transform_5, window_bounds = array<i64: 1, 10, 128>}]} {
    %c0 = arith.constant 0 : index
    %c0_0 = arith.constant 0 : index
    %c0_1 = arith.constant 0 : index
    %0 = vector.load %arg1[%c0, %c0_0, %c0_1] : memref<1x10x40xbf16, #tpu.memory_space<vmem>>, vector<1x8x40xbf16>
    %1 = vector.shape_cast %0 : vector<1x8x40xbf16> to vector<8x40xbf16>
    %c0_2 = arith.constant 0 : index
    %c0_3 = arith.constant 0 : index
    %c0_4 = arith.constant 0 : index
    %2 = vector.load %arg2[%c0_2, %c0_3, %c0_4] : memref<3x40x128xbf16, #tpu.memory_space<vmem>>, vector<1x40x128xbf16>
    %3 = vector.shape_cast %2 : vector<1x40x128xbf16> to vector<40x128xbf16>
    %cst = arith.constant dense<0.000000e+00> : vector<8x128xf32>
    %4 = tpu.matmul %1, %3, %cst {dimension_numbers = #tpu.dot_dimension_numbers<[1], [0], [0], [1], [0, 0, 1, 1], [], []>} : vector<8x40xbf16>, vector<40x128xbf16>, vector<8x128xf32> -> vector<8x128xf32>
    %c0_5 = arith.constant 0 : index
    %c1 = arith.constant 1 : index
    %c0_6 = arith.constant 0 : index
    %5 = vector.load %arg1[%c0_5, %c1, %c0_6] : memref<1x10x40xbf16, #tpu.memory_space<vmem>>, vector<1x8x40xbf16>
    %6 = vector.shape_cast %5 : vector<1x8x40xbf16> to vector<8x40xbf16>
    %c1_7 = arith.constant 1 : index
    %c0_8 = arith.constant 0 : index
    %c0_9 = arith.constant 0 : index
    %7 = vector.load %arg2[%c1_7, %c0_8, %c0_9] : memref<3x40x128xbf16, #tpu.memory_space<vmem>>, vector<1x40x128xbf16>
    %8 = vector.shape_cast %7 : vector<1x40x128xbf16> to vector<40x128xbf16>
    %cst_10 = arith.constant dense<0.000000e+00> : vector<8x128xf32>
    %9 = tpu.matmul %6, %8, %cst_10 {dimension_numbers = #tpu.dot_dimension_numbers<[1], [0], [0], [1], [0, 0, 1, 1], [], []>} : vector<8x40xbf16>, vector<40x128xbf16>, vector<8x128xf32> -> vector<8x128xf32>
    %10 = arith.addf %4, %9 : vector<8x128xf32>
    %c0_11 = arith.constant 0 : index
    %c2 = arith.constant 2 : index
    %c0_12 = arith.constant 0 : index
    %11 = vector.load %arg1[%c0_11, %c2, %c0_12] : memref<1x10x40xbf16, #tpu.memory_space<vmem>>, vector<1x8x40xbf16>
    %12 = vector.shape_cast %11 : vector<1x8x40xbf16> to vector<8x40xbf16>
    %c2_13 = arith.constant 2 : index
    %c0_14 = arith.constant 0 : index
    %c0_15 = arith.constant 0 : index
    %13 = vector.load %arg2[%c2_13, %c0_14, %c0_15] : memref<3x40x128xbf16, #tpu.memory_space<vmem>>, vector<1x40x128xbf16>
    %14 = vector.shape_cast %13 : vector<1x40x128xbf16> to vector<40x128xbf16>
    %cst_16 = arith.constant dense<0.000000e+00> : vector<8x128xf32>
    %15 = tpu.matmul %12, %14, %cst_16 {dimension_numbers = #tpu.dot_dimension_numbers<[1], [0], [0], [1], [0, 0, 1, 1], [], []>} : vector<8x40xbf16>, vector<40x128xbf16>, vector<8x128xf32> -> vector<8x128xf32>
    %16 = arith.addf %10, %15 : vector<8x128xf32>
    %c0_17 = arith.constant 0 : index
    %c0_18 = arith.constant 0 : index
    %17 = vector.load %arg3[%c0_17, %c0_18] : memref<1x128xf32, #tpu.memory_space<vmem>>, vector<1x128xf32>
    %18 = vector.broadcast %17 : vector<1x128xf32> to vector<8x128xf32>
    %19 = arith.addf %16, %18 : vector<8x128xf32>
    %cst_19 = arith.constant 0.000000e+00 : f32
    %20 = vector.broadcast %cst_19 : f32 to vector<8x128xf32>
    %21 = arith.maximumf %19, %20 : vector<8x128xf32>
    %cst_20 = arith.constant 0.000000e+00 : bf16
    %22 = vector.broadcast %cst_20 : bf16 to vector<1x128xbf16>
    %c0_21 = arith.constant 0 : index
    %c0_22 = arith.constant 0 : index
    %23 = vector.load %arg7[%c0_21, %c0_22] : memref<10x128xbf16, #tpu.memory_space<vmem>>, vector<1x128xbf16>
    tpu.vector_store %arg7[%c0_21, %c0_22], %22 {strides = array<i32>} : memref<10x128xbf16, #tpu.memory_space<vmem>>, vector<1x128xbf16>,
    %c9 = arith.constant 9 : index
    %c0_23 = arith.constant 0 : index
    %24 = vector.load %arg7[%c9, %c0_23] : memref<10x128xbf16, #tpu.memory_space<vmem>>, vector<1x128xbf16>
    tpu.vector_store %arg7[%c9, %c0_23], %22 {strides = array<i32>} : memref<10x128xbf16, #tpu.memory_space<vmem>>, vector<1x128xbf16>,
    %25 = arith.truncf %21 : vector<8x128xf32> to vector<8x128xbf16>
    %c1_24 = arith.constant 1 : index
    %c0_25 = arith.constant 0 : index
    %26 = vector.load %arg7[%c1_24, %c0_25] : memref<10x128xbf16, #tpu.memory_space<vmem>>, vector<8x128xbf16>
    tpu.vector_store %arg7[%c1_24, %c0_25], %25 {strides = array<i32>} : memref<10x128xbf16, #tpu.memory_space<vmem>>, vector<8x128xbf16>,
    %c0_26 = arith.constant 0 : index
    %c0_27 = arith.constant 0 : index
    %27 = vector.load %arg7[%c0_26, %c0_27] : memref<10x128xbf16, #tpu.memory_space<vmem>>, vector<8x128xbf16>
    %c0_28 = arith.constant 0 : index
    %c0_29 = arith.constant 0 : index
    %c0_30 = arith.constant 0 : index
    %28 = vector.load %arg4[%c0_28, %c0_29, %c0_30] : memref<3x128x128xbf16, #tpu.memory_space<vmem>>, vector<1x128x128xbf16>
    %29 = vector.shape_cast %28 : vector<1x128x128xbf16> to vector<128x128xbf16>
    %cst_31 = arith.constant dense<0.000000e+00> : vector<8x128xf32>
    %30 = tpu.matmul %27, %29, %cst_31 {dimension_numbers = #tpu.dot_dimension_numbers<[1], [0], [0], [1], [0, 0, 1, 1], [], []>} : vector<8x128xbf16>, vector<128x128xbf16>, vector<8x128xf32> -> vector<8x128xf32>
    %c1_32 = arith.constant 1 : index
    %c0_33 = arith.constant 0 : index
    %31 = vector.load %arg7[%c1_32, %c0_33] : memref<10x128xbf16, #tpu.memory_space<vmem>>, vector<8x128xbf16>
    %c1_34 = arith.constant 1 : index
    %c0_35 = arith.constant 0 : index
    %c0_36 = arith.constant 0 : index
    %32 = vector.load %arg4[%c1_34, %c0_35, %c0_36] : memref<3x128x128xbf16, #tpu.memory_space<vmem>>, vector<1x128x128xbf16>
    %33 = vector.shape_cast %32 : vector<1x128x128xbf16> to vector<128x128xbf16>
    %cst_37 = arith.constant dense<0.000000e+00> : vector<8x128xf32>
    %34 = tpu.matmul %31, %33, %cst_37 {dimension_numbers = #tpu.dot_dimension_numbers<[1], [0], [0], [1], [0, 0, 1, 1], [], []>} : vector<8x128xbf16>, vector<128x128xbf16>, vector<8x128xf32> -> vector<8x128xf32>
    %35 = arith.addf %30, %34 : vector<8x128xf32>
    %c2_38 = arith.constant 2 : index
    %c0_39 = arith.constant 0 : index
    %36 = vector.load %arg7[%c2_38, %c0_39] : memref<10x128xbf16, #tpu.memory_space<vmem>>, vector<8x128xbf16>
    %c2_40 = arith.constant 2 : index
    %c0_41 = arith.constant 0 : index
    %c0_42 = arith.constant 0 : index
    %37 = vector.load %arg4[%c2_40, %c0_41, %c0_42] : memref<3x128x128xbf16, #tpu.memory_space<vmem>>, vector<1x128x128xbf16>
    %38 = vector.shape_cast %37 : vector<1x128x128xbf16> to vector<128x128xbf16>
    %cst_43 = arith.constant dense<0.000000e+00> : vector<8x128xf32>
    %39 = tpu.matmul %36, %38, %cst_43 {dimension_numbers = #tpu.dot_dimension_numbers<[1], [0], [0], [1], [0, 0, 1, 1], [], []>} : vector<8x128xbf16>, vector<128x128xbf16>, vector<8x128xf32> -> vector<8x128xf32>
    %40 = arith.addf %35, %39 : vector<8x128xf32>
    %c0_44 = arith.constant 0 : index
    %c0_45 = arith.constant 0 : index
    %41 = vector.load %arg5[%c0_44, %c0_45] : memref<1x128xf32, #tpu.memory_space<vmem>>, vector<1x128xf32>
    %42 = vector.broadcast %41 : vector<1x128xf32> to vector<8x128xf32>
    %43 = arith.addf %40, %42 : vector<8x128xf32>
    %cst_46 = arith.constant 0.000000e+00 : f32
    %44 = vector.broadcast %cst_46 : f32 to vector<8x128xf32>
    %45 = arith.maximumf %43, %44 : vector<8x128xf32>
    %c0_47 = arith.constant 0 : index
    %c0_48 = arith.constant 0 : index
    %c0_49 = arith.constant 0 : index
    %46 = vector.load %arg6[%c0_47, %c0_48, %c0_49] : memref<1x10x128xf32, #tpu.memory_space<vmem>>, vector<1x8x128xf32>
    %47 = vector.shape_cast %46 : vector<1x8x128xf32> to vector<8x128xf32>
    %48 = vector.shape_cast %45 : vector<8x128xf32> to vector<1x8x128xf32>
    tpu.vector_store %arg6[%c0_47, %c0_48, %c0_49], %48 {strides = array<i32>} : memref<1x10x128xf32, #tpu.memory_space<vmem>>, vector<1x8x128xf32>,
    %cst_50 = arith.constant 0.000000e+00 : f32
    %49 = vector.broadcast %cst_50 : f32 to vector<2x128xf32>
    %c0_51 = arith.constant 0 : index
    %c8 = arith.constant 8 : index
    %c0_52 = arith.constant 0 : index
    %50 = vector.load %arg6[%c0_51, %c8, %c0_52] : memref<1x10x128xf32, #tpu.memory_space<vmem>>, vector<1x2x128xf32>
    %51 = vector.shape_cast %50 : vector<1x2x128xf32> to vector<2x128xf32>
    %52 = vector.shape_cast %49 : vector<2x128xf32> to vector<1x2x128xf32>
    tpu.vector_store %arg6[%c0_51, %c8, %c0_52], %52 {strides = array<i32>} : memref<1x10x128xf32, #tpu.memory_space<vmem>>, vector<1x2x128xf32>,
    return
  }
  func.func @transform_0(%arg0: i32) -> (i32, i32, i32) {
    %c0_i32 = arith.constant 0 : i32
    %c0_i32_0 = arith.constant 0 : i32
    %c0_i32_1 = arith.constant 0 : i32
    return %arg0, %c0_i32, %c0_i32_0 : i32, i32, i32
  }
  func.func @transform_1(%arg0: i32) -> (i32, i32, i32) {
    %c0_i32 = arith.constant 0 : i32
    %c0_i32_0 = arith.constant 0 : i32
    %c0_i32_1 = arith.constant 0 : i32
    %c0_i32_2 = arith.constant 0 : i32
    return %c0_i32, %c0_i32_0, %c0_i32_1 : i32, i32, i32
  }
  func.func @transform_2(%arg0: i32) -> (i32, i32) {
    %c0_i32 = arith.constant 0 : i32
    %c0_i32_0 = arith.constant 0 : i32
    %c0_i32_1 = arith.constant 0 : i32
    return %c0_i32, %c0_i32_0 : i32, i32
  }
  func.func @transform_3(%arg0: i32) -> (i32, i32, i32) {
    %c0_i32 = arith.constant 0 : i32
    %c0_i32_0 = arith.constant 0 : i32
    %c0_i32_1 = arith.constant 0 : i32
    %c0_i32_2 = arith.constant 0 : i32
    return %c0_i32, %c0_i32_0, %c0_i32_1 : i32, i32, i32
  }
  func.func @transform_4(%arg0: i32) -> (i32, i32) {
    %c0_i32 = arith.constant 0 : i32
    %c0_i32_0 = arith.constant 0 : i32
    %c0_i32_1 = arith.constant 0 : i32
    return %c0_i32, %c0_i32_0 : i32, i32
  }
  func.func @transform_5(%arg0: i32) -> (i32, i32, i32) {
    %c0_i32 = arith.constant 0 : i32
    %c0_i32_0 = arith.constant 0 : i32
    %c0_i32_1 = arith.constant 0 : i32
    return %arg0, %c0_i32, %c0_i32_0 : i32, i32, i32
  }
}

module attributes {stable_mosaic.version = 11 : i64} {
  func.func @_double_conv_kernel(%arg0: i32, %arg1: memref<1x10x40xf32, #tpu.memory_space<vmem>>, %arg2: memref<3x40x128xf32, #tpu.memory_space<vmem>>, %arg3: memref<1x128xf32, #tpu.memory_space<vmem>>, %arg4: memref<3x128x128xf32, #tpu.memory_space<vmem>>, %arg5: memref<1x128xf32, #tpu.memory_space<vmem>>, %arg6: memref<1x10x128xf32, #tpu.memory_space<vmem>>, %arg7: memref<10x128xf32, #tpu.memory_space<vmem>>) attributes {dimension_semantics = [#tpu.dimension_semantics<parallel>], iteration_bounds = array<i64: 2>, scalar_prefetch = 0 : i64, scratch_operands = 1 : i64, tpu.core_type = #tpu.core_type<tc>, window_params = [{transform_indices = @transform_0, window_bounds = array<i64: 1, 10, 40>}, {pipeline_mode = #tpu.pipeline_mode<synchronous>, transform_indices = @transform_1, window_bounds = array<i64: 3, 40, 128>}, {pipeline_mode = #tpu.pipeline_mode<synchronous>, transform_indices = @transform_2, window_bounds = array<i64: 1, 128>}, {pipeline_mode = #tpu.pipeline_mode<synchronous>, transform_indices = @transform_3, window_bounds = array<i64: 3, 128, 128>}, {pipeline_mode = #tpu.pipeline_mode<synchronous>, transform_indices = @transform_4, window_bounds = array<i64: 1, 128>}, {transform_indices = @transform_5, window_bounds = array<i64: 1, 10, 128>}]} {
    %c0 = arith.constant 0 : index
    %c0_0 = arith.constant 0 : index
    %c0_1 = arith.constant 0 : index
    %0 = vector.load %arg1[%c0, %c0_0, %c0_1] : memref<1x10x40xf32, #tpu.memory_space<vmem>>, vector<1x8x40xf32>
    %1 = vector.shape_cast %0 : vector<1x8x40xf32> to vector<8x40xf32>
    %c0_2 = arith.constant 0 : index
    %c0_3 = arith.constant 0 : index
    %c0_4 = arith.constant 0 : index
    %2 = vector.load %arg2[%c0_2, %c0_3, %c0_4] : memref<3x40x128xf32, #tpu.memory_space<vmem>>, vector<1x40x128xf32>
    %3 = vector.shape_cast %2 : vector<1x40x128xf32> to vector<40x128xf32>
    %cst = arith.constant dense<0.000000e+00> : vector<8x128xf32>
    %4 = tpu.matmul %1, %3, %cst {dimension_numbers = #tpu.dot_dimension_numbers<[1], [0], [0], [1], [0, 0, 1, 1], [], []>} : vector<8x40xf32>, vector<40x128xf32>, vector<8x128xf32> -> vector<8x128xf32>
    %c0_5 = arith.constant 0 : index
    %c1 = arith.constant 1 : index
    %c0_6 = arith.constant 0 : index
    %5 = vector.load %arg1[%c0_5, %c1, %c0_6] : memref<1x10x40xf32, #tpu.memory_space<vmem>>, vector<1x8x40xf32>
    %6 = vector.shape_cast %5 : vector<1x8x40xf32> to vector<8x40xf32>
    %c1_7 = arith.constant 1 : index
    %c0_8 = arith.constant 0 : index
    %c0_9 = arith.constant 0 : index
    %7 = vector.load %arg2[%c1_7, %c0_8, %c0_9] : memref<3x40x128xf32, #tpu.memory_space<vmem>>, vector<1x40x128xf32>
    %8 = vector.shape_cast %7 : vector<1x40x128xf32> to vector<40x128xf32>
    %cst_10 = arith.constant dense<0.000000e+00> : vector<8x128xf32>
    %9 = tpu.matmul %6, %8, %cst_10 {dimension_numbers = #tpu.dot_dimension_numbers<[1], [0], [0], [1], [0, 0, 1, 1], [], []>} : vector<8x40xf32>, vector<40x128xf32>, vector<8x128xf32> -> vector<8x128xf32>
    %10 = arith.addf %4, %9 : vector<8x128xf32>
    %c0_11 = arith.constant 0 : index
    %c2 = arith.constant 2 : index
    %c0_12 = arith.constant 0 : index
    %11 = vector.load %arg1[%c0_11, %c2, %c0_12] : memref<1x10x40xf32, #tpu.memory_space<vmem>>, vector<1x8x40xf32>
    %12 = vector.shape_cast %11 : vector<1x8x40xf32> to vector<8x40xf32>
    %c2_13 = arith.constant 2 : index
    %c0_14 = arith.constant 0 : index
    %c0_15 = arith.constant 0 : index
    %13 = vector.load %arg2[%c2_13, %c0_14, %c0_15] : memref<3x40x128xf32, #tpu.memory_space<vmem>>, vector<1x40x128xf32>
    %14 = vector.shape_cast %13 : vector<1x40x128xf32> to vector<40x128xf32>
    %cst_16 = arith.constant dense<0.000000e+00> : vector<8x128xf32>
    %15 = tpu.matmul %12, %14, %cst_16 {dimension_numbers = #tpu.dot_dimension_numbers<[1], [0], [0], [1], [0, 0, 1, 1], [], []>} : vector<8x40xf32>, vector<40x128xf32>, vector<8x128xf32> -> vector<8x128xf32>
    %16 = arith.addf %10, %15 : vector<8x128xf32>
    %c0_17 = arith.constant 0 : index
    %c0_18 = arith.constant 0 : index
    %17 = vector.load %arg3[%c0_17, %c0_18] : memref<1x128xf32, #tpu.memory_space<vmem>>, vector<1x128xf32>
    %18 = vector.broadcast %17 : vector<1x128xf32> to vector<8x128xf32>
    %19 = arith.addf %16, %18 : vector<8x128xf32>
    %cst_19 = arith.constant 0.000000e+00 : f32
    %20 = vector.broadcast %cst_19 : f32 to vector<8x128xf32>
    %21 = arith.maximumf %19, %20 : vector<8x128xf32>
    %cst_20 = arith.constant 0.000000e+00 : f32
    %22 = vector.broadcast %cst_20 : f32 to vector<1x128xf32>
    %c0_21 = arith.constant 0 : index
    %c0_22 = arith.constant 0 : index
    %23 = vector.load %arg7[%c0_21, %c0_22] : memref<10x128xf32, #tpu.memory_space<vmem>>, vector<1x128xf32>
    tpu.vector_store %arg7[%c0_21, %c0_22], %22 {strides = array<i32>} : memref<10x128xf32, #tpu.memory_space<vmem>>, vector<1x128xf32>,
    %c9 = arith.constant 9 : index
    %c0_23 = arith.constant 0 : index
    %24 = vector.load %arg7[%c9, %c0_23] : memref<10x128xf32, #tpu.memory_space<vmem>>, vector<1x128xf32>
    tpu.vector_store %arg7[%c9, %c0_23], %22 {strides = array<i32>} : memref<10x128xf32, #tpu.memory_space<vmem>>, vector<1x128xf32>,
    %c1_24 = arith.constant 1 : index
    %c0_25 = arith.constant 0 : index
    %25 = vector.load %arg7[%c1_24, %c0_25] : memref<10x128xf32, #tpu.memory_space<vmem>>, vector<8x128xf32>
    tpu.vector_store %arg7[%c1_24, %c0_25], %21 {strides = array<i32>} : memref<10x128xf32, #tpu.memory_space<vmem>>, vector<8x128xf32>,
    %c0_26 = arith.constant 0 : index
    %c0_27 = arith.constant 0 : index
    %26 = vector.load %arg7[%c0_26, %c0_27] : memref<10x128xf32, #tpu.memory_space<vmem>>, vector<8x128xf32>
    %c0_28 = arith.constant 0 : index
    %c0_29 = arith.constant 0 : index
    %c0_30 = arith.constant 0 : index
    %27 = vector.load %arg4[%c0_28, %c0_29, %c0_30] : memref<3x128x128xf32, #tpu.memory_space<vmem>>, vector<1x128x128xf32>
    %28 = vector.shape_cast %27 : vector<1x128x128xf32> to vector<128x128xf32>
    %cst_31 = arith.constant dense<0.000000e+00> : vector<8x128xf32>
    %29 = tpu.matmul %26, %28, %cst_31 {dimension_numbers = #tpu.dot_dimension_numbers<[1], [0], [0], [1], [0, 0, 1, 1], [], []>} : vector<8x128xf32>, vector<128x128xf32>, vector<8x128xf32> -> vector<8x128xf32>
    %c1_32 = arith.constant 1 : index
    %c0_33 = arith.constant 0 : index
    %30 = vector.load %arg7[%c1_32, %c0_33] : memref<10x128xf32, #tpu.memory_space<vmem>>, vector<8x128xf32>
    %c1_34 = arith.constant 1 : index
    %c0_35 = arith.constant 0 : index
    %c0_36 = arith.constant 0 : index
    %31 = vector.load %arg4[%c1_34, %c0_35, %c0_36] : memref<3x128x128xf32, #tpu.memory_space<vmem>>, vector<1x128x128xf32>
    %32 = vector.shape_cast %31 : vector<1x128x128xf32> to vector<128x128xf32>
    %cst_37 = arith.constant dense<0.000000e+00> : vector<8x128xf32>
    %33 = tpu.matmul %30, %32, %cst_37 {dimension_numbers = #tpu.dot_dimension_numbers<[1], [0], [0], [1], [0, 0, 1, 1], [], []>} : vector<8x128xf32>, vector<128x128xf32>, vector<8x128xf32> -> vector<8x128xf32>
    %34 = arith.addf %29, %33 : vector<8x128xf32>
    %c2_38 = arith.constant 2 : index
    %c0_39 = arith.constant 0 : index
    %35 = vector.load %arg7[%c2_38, %c0_39] : memref<10x128xf32, #tpu.memory_space<vmem>>, vector<8x128xf32>
    %c2_40 = arith.constant 2 : index
    %c0_41 = arith.constant 0 : index
    %c0_42 = arith.constant 0 : index
    %36 = vector.load %arg4[%c2_40, %c0_41, %c0_42] : memref<3x128x128xf32, #tpu.memory_space<vmem>>, vector<1x128x128xf32>
    %37 = vector.shape_cast %36 : vector<1x128x128xf32> to vector<128x128xf32>
    %cst_43 = arith.constant dense<0.000000e+00> : vector<8x128xf32>
    %38 = tpu.matmul %35, %37, %cst_43 {dimension_numbers = #tpu.dot_dimension_numbers<[1], [0], [0], [1], [0, 0, 1, 1], [], []>} : vector<8x128xf32>, vector<128x128xf32>, vector<8x128xf32> -> vector<8x128xf32>
    %39 = arith.addf %34, %38 : vector<8x128xf32>
    %c0_44 = arith.constant 0 : index
    %c0_45 = arith.constant 0 : index
    %40 = vector.load %arg5[%c0_44, %c0_45] : memref<1x128xf32, #tpu.memory_space<vmem>>, vector<1x128xf32>
    %41 = vector.broadcast %40 : vector<1x128xf32> to vector<8x128xf32>
    %42 = arith.addf %39, %41 : vector<8x128xf32>
    %cst_46 = arith.constant 0.000000e+00 : f32
    %43 = vector.broadcast %cst_46 : f32 to vector<8x128xf32>
    %44 = arith.maximumf %42, %43 : vector<8x128xf32>
    %c0_47 = arith.constant 0 : index
    %c0_48 = arith.constant 0 : index
    %c0_49 = arith.constant 0 : index
    %45 = vector.load %arg6[%c0_47, %c0_48, %c0_49] : memref<1x10x128xf32, #tpu.memory_space<vmem>>, vector<1x8x128xf32>
    %46 = vector.shape_cast %45 : vector<1x8x128xf32> to vector<8x128xf32>
    %47 = vector.shape_cast %44 : vector<8x128xf32> to vector<1x8x128xf32>
    tpu.vector_store %arg6[%c0_47, %c0_48, %c0_49], %47 {strides = array<i32>} : memref<1x10x128xf32, #tpu.memory_space<vmem>>, vector<1x8x128xf32>,
    %cst_50 = arith.constant 0.000000e+00 : f32
    %48 = vector.broadcast %cst_50 : f32 to vector<2x128xf32>
    %c0_51 = arith.constant 0 : index
    %c8 = arith.constant 8 : index
    %c0_52 = arith.constant 0 : index
    %49 = vector.load %arg6[%c0_51, %c8, %c0_52] : memref<1x10x128xf32, #tpu.memory_space<vmem>>, vector<1x2x128xf32>
    %50 = vector.shape_cast %49 : vector<1x2x128xf32> to vector<2x128xf32>
    %51 = vector.shape_cast %48 : vector<2x128xf32> to vector<1x2x128xf32>
    tpu.vector_store %arg6[%c0_51, %c8, %c0_52], %51 {strides = array<i32>} : memref<1x10x128xf32, #tpu.memory_space<vmem>>, vector<1x2x128xf32>,
    return
  }
  func.func @transform_0(%arg0: i32) -> (i32, i32, i32) {
    %c0_i32 = arith.constant 0 : i32
    %c0_i32_0 = arith.constant 0 : i32
    %c0_i32_1 = arith.constant 0 : i32
    return %arg0, %c0_i32, %c0_i32_0 : i32, i32, i32
  }
  func.func @transform_1(%arg0: i32) -> (i32, i32, i32) {
    %c0_i32 = arith.constant 0 : i32
    %c0_i32_0 = arith.constant 0 : i32
    %c0_i32_1 = arith.constant 0 : i32
    %c0_i32_2 = arith.constant 0 : i32
    return %c0_i32, %c0_i32_0, %c0_i32_1 : i32, i32, i32
  }
  func.func @transform_2(%arg0: i32) -> (i32, i32) {
    %c0_i32 = arith.constant 0 : i32
    %c0_i32_0 = arith.constant 0 : i32
    %c0_i32_1 = arith.constant 0 : i32
    return %c0_i32, %c0_i32_0 : i32, i32
  }
  func.func @transform_3(%arg0: i32) -> (i32, i32, i32) {
    %c0_i32 = arith.constant 0 : i32
    %c0_i32_0 = arith.constant 0 : i32
    %c0_i32_1 = arith.constant 0 : i32
    %c0_i32_2 = arith.constant 0 : i32
    return %c0_i32, %c0_i32_0, %c0_i32_1 : i32, i32, i32
  }
  func.func @transform_4(%arg0: i32) -> (i32, i32) {
    %c0_i32 = arith.constant 0 : i32
    %c0_i32_0 = arith.constant 0 : i32
    %c0_i32_1 = arith.constant 0 : i32
    return %c0_i32, %c0_i32_0 : i32, i32
  }
  func.func @transform_5(%arg0: i32) -> (i32, i32, i32) {
    %c0_i32 = arith.constant 0 : i32
    %c0_i32_0 = arith.constant 0 : i32
    %c0_i32_1 = arith.constant 0 : i32
    return %arg0, %c0_i32, %c0_i32_0 : i32, i32, i32
  }
}

</mosaic_0001>

<llo_original>
// kernel: down_forward.1
$region0: #{down_forward.1}
  #allocation0 [shape = 'u32[]', space=smem, size = 0x4, offset = 0x4, fixed_abs, tag = 'smem constant byte address 0x4 - core index']
  #allocation1 [shape = 'u32[72,128]{1,0:T(1,128)}', space=vmem, size = 0x9000, scoped, tag = 'internal scratch']
  #allocation2 [shape = 'bf16[10,128]{1,0:T(8,128)(2,1)}', space=vmem, size = 0x1000, scoped, tag = 'scratch operand']
  %s0 = inlined_call_operand.vmem [shape: bf16[2,10,40], index: 0, kind: input, shape index: {}]
  %s1 = inlined_call_operand.vmem [shape: bf16[3,40,128], index: 1, kind: input, shape index: {}]
  %s2 = inlined_call_operand.vmem [shape: f32[1,128], index: 2, kind: input, shape index: {}]
  %s3 = inlined_call_operand.vmem [shape: bf16[3,128,128], index: 3, kind: input, shape index: {}]
  %s4 = inlined_call_operand.vmem [shape: f32[1,128], index: 4, kind: input, shape index: {}]
  %s5 = inlined_call_operand.vmem [shape: f32[2,10,128], index: 5, kind: output, shape index: {}]
  %s6 = sld [smem:[#allocation0]]
  $region53: #{down_forward.1} parent=0
    _
  %s8 = ssub.s32 1, %s6
  %s9 = scalar_select 0, %s8, %s6
  loop: start=0, step=1, limit=4
  $region2: #{down_forward.1} parent=0 // loop_pre_header
    _
  $region3: #{down_forward.1} parent=0 // loop_header
    %s11 = sphi 0, %s15
    %p12 = scmp.ge.s32.totalorder %s11, 4
    %s21 = sphi 0, %s23
    %s24 = sphi 0, %s21
    %s25 = sphi 0, %s24
    %s41 = sphi 0, %s25
    %s45 = sphi 0, %s45
    %s47 = sphi 0, %s45
    %s48 = sphi 0, %s47
    %s62 = sphi 0, %s48
    %s66 = sphi 0, %s66
    %s68 = sphi 0, %s66
    %s69 = sphi 0, %s68
    %s83 = sphi 0, %s69
    %s87 = sphi 0, %s87
    %s89 = sphi 0, %s87
    %s90 = sphi 0, %s89
    %s104 = sphi 0, %s90
    %s108 = sphi 0, %s108
    %s110 = sphi 0, %s108
    %s111 = sphi 0, %s110
    %s125 = sphi 0, %s111
    %s131 = sphi 0, %s133
    %s134 = sphi 0, %s131
    %s135 = sphi 0, %s134
    %s151 = sphi 0, %s135
  $region4: #{down_forward.1} parent=0 // loop_header_branch
    %14 = sbr.rel (%p12) target = $region8
  $region5: #{down_forward.1} parent=0 // loop_body
    %s16 = ssub.s32 %s11, 1
    %s17 = ssub.s32 %s11, 2
    %s18 = sadd.s32 %s11, 1
    %s19 = ssub.s32 %s11, %s18
    %p20 = scmp.eq.s32.totalorder %s19, 0
    %s22 = sadd.s32 %s21, 1
    %s23 = scalar_select %p20, %s21, %s22
    %p26 = pneg %p20
    %p27 = scmp.eq.s32.totalorder %s11, 1
    %p28 = por %p26, %p27
    %p29 = scmp.ne.s32.totalorder %s21, %s24
    %p30 = scmp.eq.s32.totalorder %s11, 0
    %p31 = por %p29, %p30
    %p32 = scmp.ne.s32.totalorder %s21, %s24
    %p33 = scmp.eq.s32.totalorder %s16, 1
    %p34 = por %p32, %p33
    %p35 = scmp.ne.s32.totalorder %s24, %s25
    %p36 = scmp.eq.s32.totalorder %s16, 0
    %p37 = por %p35, %p36
    %p38 = scmp.ne.s32.totalorder %s24, %s25
    %p39 = scmp.eq.s32.totalorder %s17, 1
    %p40 = por %p38, %p39
    %p42 = scmp.ne.s32.totalorder %s25, %s41
    %p43 = scmp.eq.s32.totalorder %s17, 0
    %p44 = por %p42, %p43
    %s46 = sadd.s32 %s45, 1
    %p49 = scmp.eq.s32.totalorder %s11, 1
    %p50 = scmp.ne.s32.totalorder %s45, %s47
    %p51 = scmp.eq.s32.totalorder %s11, 0
    %p52 = por %p50, %p51
    %p53 = scmp.ne.s32.totalorder %s45, %s47
    %p54 = scmp.eq.s32.totalorder %s16, 1
    %p55 = por %p53, %p54
    %p56 = scmp.ne.s32.totalorder %s47, %s48
    %p57 = scmp.eq.s32.totalorder %s16, 0
    %p58 = por %p56, %p57
    %p59 = scmp.ne.s32.totalorder %s47, %s48
    %p60 = scmp.eq.s32.totalorder %s17, 1
    %p61 = por %p59, %p60
    %p63 = scmp.ne.s32.totalorder %s48, %s62
    %p64 = scmp.eq.s32.totalorder %s17, 0
    %p65 = por %p63, %p64
    %s67 = sadd.s32 %s66, 1
    %p70 = scmp.eq.s32.totalorder %s11, 1
    %p71 = scmp.ne.s32.totalorder %s66, %s68
    %p72 = scmp.eq.s32.totalorder %s11, 0
    %p73 = por %p71, %p72
    %p74 = scmp.ne.s32.totalorder %s66, %s68
    %p75 = scmp.eq.s32.totalorder %s16, 1
    %p76 = por %p74, %p75
    %p77 = scmp.ne.s32.totalorder %s68, %s69
    %p78 = scmp.eq.s32.totalorder %s16, 0
    %p79 = por %p77, %p78
    %p80 = scmp.ne.s32.totalorder %s68, %s69
    %p81 = scmp.eq.s32.totalorder %s17, 1
    %p82 = por %p80, %p81
    %p84 = scmp.ne.s32.totalorder %s69, %s83
    %p85 = scmp.eq.s32.totalorder %s17, 0
    %p86 = por %p84, %p85
    %s88 = sadd.s32 %s87, 1
    %p91 = scmp.eq.s32.totalorder %s11, 1
    %p92 = scmp.ne.s32.totalorder %s87, %s89
    %p93 = scmp.eq.s32.totalorder %s11, 0
    %p94 = por %p92, %p93
    %p95 = scmp.ne.s32.totalorder %s87, %s89
    %p96 = scmp.eq.s32.totalorder %s16, 1
    %p97 = por %p95, %p96
    %p98 = scmp.ne.s32.totalorder %s89, %s90
    %p99 = scmp.eq.s32.totalorder %s16, 0
    %p100 = por %p98, %p99
    %p101 = scmp.ne.s32.totalorder %s89, %s90
    %p102 = scmp.eq.s32.totalorder %s17, 1
    %p103 = por %p101, %p102
    %p105 = scmp.ne.s32.totalorder %s90, %s104
    %p106 = scmp.eq.s32.totalorder %s17, 0
    %p107 = por %p105, %p106
    %s109 = sadd.s32 %s108, 1
    %p112 = scmp.eq.s32.totalorder %s11, 1
    %p113 = scmp.ne.s32.totalorder %s108, %s110
    %p114 = scmp.eq.s32.totalorder %s11, 0
    %p115 = por %p113, %p114
    %p116 = scmp.ne.s32.totalorder %s108, %s110
    %p117 = scmp.eq.s32.totalorder %s16, 1
    %p118 = por %p116, %p117
    %p119 = scmp.ne.s32.totalorder %s110, %s111
    %p120 = scmp.eq.s32.totalorder %s16, 0
    %p121 = por %p119, %p120
    %p122 = scmp.ne.s32.totalorder %s110, %s111
    %p123 = scmp.eq.s32.totalorder %s17, 1
    %p124 = por %p122, %p123
    %p126 = scmp.ne.s32.totalorder %s111, %s125
    %p127 = scmp.eq.s32.totalorder %s17, 0
    %p128 = por %p126, %p127
    %s129 = ssub.s32 %s11, %s18
    %p130 = scmp.eq.s32.totalorder %s129, 0
    %s132 = sadd.s32 %s131, 1
    %s133 = scalar_select %p130, %s131, %s132
    %p136 = pneg %p130
    %p137 = scmp.eq.s32.totalorder %s11, 1
    %p138 = por %p136, %p137
    %p139 = scmp.ne.s32.totalorder %s131, %s134
    %p140 = scmp.eq.s32.totalorder %s11, 0
    %p141 = por %p139, %p140
    %p142 = scmp.ne.s32.totalorder %s131, %s134
    %p143 = scmp.eq.s32.totalorder %s16, 1
    %p144 = por %p142, %p143
    %p145 = scmp.ne.s32.totalorder %s134, %s135
    %p146 = scmp.eq.s32.totalorder %s16, 0
    %p147 = por %p145, %p146
    %p148 = scmp.ne.s32.totalorder %s134, %s135
    %p149 = scmp.eq.s32.totalorder %s17, 1
    %p150 = por %p148, %p149
    %p152 = scmp.ne.s32.totalorder %s135, %s151
    %p153 = scmp.eq.s32.totalorder %s17, 0
    %p154 = por %p152, %p153
    %p155 = scmp.le.s32.totalorder 1, %s11
    %p156 = scmp.lt.s32.totalorder %s11, 3
    %p157 = pnand %p155, %p156
    %p158 = pneg %p157
    // Predicated region
    $region9: #{down_forward.1} parent=5 // pred_check
      _
    $region10: #{down_forward.1} parent=5 // pred_check_branch
      %160 = sbr.rel (%p157) target = $region12
    $region11: #{down_forward.1} parent=5 // pred_region
      %s161 = ssub.s32 %s11, 1
      // Predicated region
      $region13: #{down_forward.1} parent=11 // pred_check
        %p162 = pneg %p58
      $region14: #{down_forward.1} parent=11 // pred_check_branch
        %164 = sbr.rel (%p162) target = $region16
      $region15: #{down_forward.1} parent=11 // pred_region
        _
      $region16: #{down_forward.1} parent=11 // pred_fallthru
        _
      // Predicated region
      $region17: #{down_forward.1} parent=11 // pred_check
        %p165 = pneg %p79
      $region18: #{down_forward.1} parent=11 // pred_check_branch
        %167 = sbr.rel (%p165) target = $region20
      $region19: #{down_forward.1} parent=11 // pred_region
        _
      $region20: #{down_forward.1} parent=11 // pred_fallthru
        _
      // Predicated region
      $region21: #{down_forward.1} parent=11 // pred_check
        %p168 = pneg %p100
      $region22: #{down_forward.1} parent=11 // pred_check_branch
        %170 = sbr.rel (%p168) target = $region24
      $region23: #{down_forward.1} parent=11 // pred_region
        _
      $region24: #{down_forward.1} parent=11 // pred_fallthru
        _
      // Predicated region
      $region25: #{down_forward.1} parent=11 // pred_check
        %p171 = pneg %p121
      $region26: #{down_forward.1} parent=11 // pred_check_branch
        %173 = sbr.rel (%p171) target = $region28
      $region27: #{down_forward.1} parent=11 // pred_region
        _
      $region28: #{down_forward.1} parent=11 // pred_fallthru
        _
    $region12: #{down_forward.1} parent=5 // pred_fallthru
      _
    %p174 = scmp.lt.s32.totalorder %s11, 2
    // Predicated region
    $region29: #{down_forward.1} parent=5 // pred_check
      %p175 = pneg %p174
    $region30: #{down_forward.1} parent=5 // pred_check_branch
      %177 = sbr.rel (%p175) target = $region32
    $region31: #{down_forward.1} parent=5 // pred_region
      // Predicated region
      $region33: #{down_forward.1} parent=31 // pred_check
        %p178 = pneg %p31
      $region34: #{down_forward.1} parent=31 // pred_check_branch
        %180 = sbr.rel (%p178) target = $region36
      $region35: #{down_forward.1} parent=31 // pred_region
        %p181 = scmp.lt.s32.totalorder %s11, 1
        %s182 = scalar_select %p181, %s11, 1
        %s183 = smul.addr %s182, 2
        %s184 = smul.addr %s183, 4
        %s185 = scalar_lea.vmem %s0, %s184
      $region36: #{down_forward.1} parent=31 // pred_fallthru
        _
    $region32: #{down_forward.1} parent=5 // pred_fallthru
      _
    %p186 = scmp.le.s32.totalorder 1, %s11
    %p187 = scmp.lt.s32.totalorder %s11, 3
    %p188 = pnand %p186, %p187
    %p189 = pneg %p188
    // Predicated region
    $region37: #{down_forward.1} parent=5 // pred_check
      _
    $region38: #{down_forward.1} parent=5 // pred_check_branch
      %191 = sbr.rel (%p188) target = $region40
    $region39: #{down_forward.1} parent=5 // pred_region
      %s192 = ssub.s32 %s11, 1
      %p193 = scmp.lt.s32.totalorder %s16, 1
      %s194 = scalar_select %p193, %s16, 1
      %s195 = smul.addr %s194, 2
      %s196 = smul.addr %s195, 4
      %s197 = scalar_lea.vmem %s0, %s196
      %p198 = pneg %p37
      %p199 = pneg %p34
      %p200 = pneg %p58
      %p201 = pneg %p55
      %p202 = pneg %p79
      %p203 = pneg %p76
      %p204 = pneg %p100
      %p205 = pneg %p97
      %p206 = pneg %p121
      %p207 = pneg %p118
      %p208 = pneg %p147
      %p209 = pneg %p144
      %p210 = scmp.lt.s32.totalorder %s16, 1
      %s211 = scalar_select %p210, %s16, 1
      %s212 = smul.addr %s211, 2
      %s213 = smul.addr %s212, 8
      %s214 = scalar_lea.vmem %s5, %s213
      %p215 = scmp.lt.s32.totalorder %s16, 1
      %s216 = scalar_select %p215, %s16, 1
      %s217 = smul.addr %s216, 2
      %s218 = smul.addr %s217, 4
      %s219 = scalar_lea.vmem %s0, %s218
      %p220 = scmp.lt.s32.totalorder %s16, 1
      %s221 = scalar_select %p220, %s16, 1
      %s222 = smul.addr %s221, 2
      %s223 = smul.addr %s222, 8
      %s224 = scalar_lea.vmem %s5, %s223
      %v226 = vld [vmem:[%s219] sm:$0xf]
      %v227 = vld [vmem:[%s1] sm:$0xf]
      %v228 = vld [vmem:[%s1 + $0x4] sm:$0xf]
      %v229 = vld [vmem:[%s1 + $0x8] sm:$0xf]
      %v230 = vld [vmem:[%s1 + $0xc] sm:$0xf]
      %v231 = vld [vmem:[%s1 + $0x10] sm:$0xf]
      %v232 = vld [vmem:[%s219 + $0x4] sm:$0x1]
      %s233 = scalar_lea.vmem %s1, 20
      %v234 = vld [vmem:[%s233] sm:$0xf]
      %v235 = vld [vmem:[%s233 + $0x4] sm:$0xf]
      %v236 = vld [vmem:[%s233 + $0x8] sm:$0xf]
      %v237 = vld [vmem:[%s233 + $0xc] sm:$0xf]
      %v238 = vld [vmem:[%s233 + $0x10] sm:$0xf]
      %v241 = vunpack.c.l.b16 %v226
      %v242 = vunpack.c.l.b16 %v232
      %v243 = vpack.c.b16 %v242, %v241
      %v245 = vshrl.u32 %v243, 16
      %v247 = vshll.u32 %v243, 16
      %v249 = vrot.slane %v247, 1
      %v250 = vor.u32 %v245, %v249
      %v256 = vunpack.c.l.b16 %v234
      %v257 = vunpack.c.l.b16 %v235
      %v258 = vunpack.c.l.b16 %v236
      %v259 = vunpack.c.l.b16 %v237
      %v260 = vunpack.c.l.b16 %v238
      %v261 = vpack.c.b16 %v257, %v256
      %v262 = vpack.c.b16 %v259, %v258
      %v263 = vpack.c.b16 %v260, %v260
      %vm266 = vcmask 326656
      %v268 = vsel %vm266, %v250, 0
      %vm270 = vcmask 1043456
      %v272 = vsel %vm270, %v263, 0
      %274 = vmatpush.bf16.msra.mxu0 0
      %275 = vmatpush.bf16.msra.mxu0 0
      %276 = vmatpush.bf16.msra.mxu0 0
      %277 = vmatpush.bf16.msra.mxu0 0
      %278 = vmatpush.bf16.msra.mxu0 0
      %279 = vmatpush.bf16.msra.mxu0 %v272
      %280 = vmatpush.bf16.msra.mxu0 %v262
      %281 = vmatpush.bf16.msra.mxu0 %v261
      %282 = vmatmul.bf16.gmra.mxu0 %v268
      %v283 = vpop.f32.mrf.mxu0
      %v284 = vadd.f32 0.0, %v283
      %v285 = vpop.f32.mrf.mxu0
      %286 = vdwg.mxu0
      %v292 = vunpack.c.l.b16 %v227
      %v293 = vunpack.c.l.b16 %v228
      %v294 = vunpack.c.l.b16 %v229
      %v295 = vunpack.c.l.b16 %v230
      %v296 = vunpack.c.l.b16 %v231
      %v297 = vpack.c.b16 %v293, %v292
      %v298 = vpack.c.b16 %v295, %v294
      %v299 = vpack.c.b16 %v296, %v296
      %v303 = vsel %vm266, %v226, 0
      %v306 = vsel %vm270, %v299, 0
      %308 = vmatpush.bf16.msra.mxu0 0
      %309 = vmatpush.bf16.msra.mxu0 0
      %310 = vmatpush.bf16.msra.mxu0 0
      %311 = vmatpush.bf16.msra.mxu0 0
      %312 = vmatpush.bf16.msra.mxu0 0
      %313 = vmatpush.bf16.msra.mxu0 %v306
      %314 = vmatpush.bf16.msra.mxu0 %v298
      %315 = vmatpush.bf16.msra.mxu0 %v297
      %316 = vmatmul.bf16.gmra.mxu0 %v303
      %v317 = vpop.f32.mrf.mxu0
      %v318 = vadd.f32 %v284, %v317
      %v319 = vpop.f32.mrf.mxu0
      %320 = vdwg.mxu0
      %v321 = vld [vmem:[%s219] sm:$0xe]
      %s322 = scalar_lea.vmem %s1, 40
      %v323 = vld [vmem:[%s322] sm:$0xf]
      %v324 = vld [vmem:[%s322 + $0x4] sm:$0xf]
      %v325 = vld [vmem:[%s322 + $0x8] sm:$0xf]
      %v326 = vld [vmem:[%s322 + $0xc] sm:$0xf]
      %v327 = vld [vmem:[%s322 + $0x10] sm:$0xf]
      %v329 = vunpack.c.l.b16 %v321
      %v330 = vpack.c.b16 %v242, %v329
      %v331 = vrot.slane %v330, 1
      %v337 = vunpack.c.l.b16 %v323
      %v338 = vunpack.c.l.b16 %v324
      %v339 = vunpack.c.l.b16 %v325
      %v340 = vunpack.c.l.b16 %v326
      %v341 = vunpack.c.l.b16 %v327
      %v342 = vpack.c.b16 %v338, %v337
      %v343 = vpack.c.b16 %v340, %v339
      %v344 = vpack.c.b16 %v341, %v341
      %v348 = vsel %vm266, %v331, 0
      %v351 = vsel %vm270, %v344, 0
      %353 = vmatpush.bf16.msra.mxu0 0
      %354 = vmatpush.bf16.msra.mxu0 0
      %355 = vmatpush.bf16.msra.mxu0 0
      %356 = vmatpush.bf16.msra.mxu0 0
      %357 = vmatpush.bf16.msra.mxu0 0
      %358 = vmatpush.bf16.msra.mxu0 %v351
      %359 = vmatpush.bf16.msra.mxu0 %v343
      %360 = vmatpush.bf16.msra.mxu0 %v342
      %361 = vmatmul.bf16.gmra.mxu0 %v348
      %v362 = vpop.f32.mrf.mxu0
      %v363 = vadd.f32 0.0, %v362
      %v364 = vpop.f32.mrf.mxu0
      %365 = vdwg.mxu0
      %v366 = vadd.f32 %v318, %v363
      %v367 = vld [vmem:[%s2] sm:$0x1]
      %v369 = vperm.slane %v367, 0
      %v371 = vadd.f32 %v366, %v369
      %v372 = vmax.f32 %v371, 0.0
      %vm373 = vcmask 1040384
      %vm374 = vsmask.f32 256
      %vm375 = vmand %vm373, %vm374
      %v376 = vld [vmem:[#allocation2] sm:$0x1]
      %v377 = vsel %vm375, 0, %v376
      %378 = vst [vmem:[#allocation2] sm:$0x1] %v377
      %vm379 = vsmask.f32 7938
      %vm380 = vmand %vm373, %vm379
      %v381 = vld [vmem:[#allocation2 + $0x4] sm:$0x1]
      %v382 = vsel %vm380, 0, %v381
      %383 = vst [vmem:[#allocation2 + $0x4] sm:$0x1] %v382
      %v384 = vpack.c.bf16 %v372, %v372
      %v386 = vshrl.u32 %v384, 16
      %v388 = vrot.slane %v386, 7
      %v389 = vshll.u32 %v384, 16
      %v391 = vor.u32 %v388, %v389
      %v392 = vrot.slane %v388, 4
      %vm395 = vcmask 1043456
      %vm396 = vmand %vm395, %vm379
      %v397 = vld [vmem:[#allocation2] sm:$0xf]
      %v398 = vsel %vm396, %v391, %v397
      %399 = vst [vmem:[#allocation2] sm:$0xf] %v398
      %v400 = vld [vmem:[#allocation2 + $0x4] sm:$0x1]
      %v401 = vsel %vm375, %v392, %v400
      %402 = vst [vmem:[#allocation2 + $0x4] sm:$0x1] %v401
      %v403 = vld [vmem:[#allocation2] sm:$0xf]
      %v404 = vld [vmem:[%s3] sm:$0xf]
      %v405 = vld [vmem:[%s3 + $0x4] sm:$0xf]
      %v406 = vld [vmem:[%s3 + $0x8] sm:$0xf]
      %v407 = vld [vmem:[%s3 + $0xc] sm:$0xf]
      %v408 = vld [vmem:[%s3 + $0x10] sm:$0xf]
      %v409 = vld [vmem:[%s3 + $0x14] sm:$0xf]
      %v410 = vld [vmem:[%s3 + $0x18] sm:$0xf]
      %v411 = vld [vmem:[%s3 + $0x1c] sm:$0xf]
      %v412 = vld [vmem:[%s3 + $0x20] sm:$0xf]
      %v413 = vld [vmem:[%s3 + $0x24] sm:$0xf]
      %v414 = vld [vmem:[%s3 + $0x28] sm:$0xf]
      %v415 = vld [vmem:[%s3 + $0x2c] sm:$0xf]
      %v416 = vld [vmem:[%s3 + $0x30] sm:$0xf]
      %v417 = vld [vmem:[%s3 + $0x34] sm:$0xf]
      %v418 = vld [vmem:[%s3 + $0x38] sm:$0xf]
      %v419 = vld [vmem:[%s3 + $0x3c] sm:$0xf]
      %v420 = vld [vmem:[#allocation2 + $0x4] sm:$0x1]
      %s421 = scalar_lea.vmem %s3, 64
      %v422 = vld [vmem:[%s421] sm:$0xf]
      %v423 = vld [vmem:[%s421 + $0x4] sm:$0xf]
      %v424 = vld [vmem:[%s421 + $0x8] sm:$0xf]
      %v425 = vld [vmem:[%s421 + $0xc] sm:$0xf]
      %v426 = vld [vmem:[%s421 + $0x10] sm:$0xf]
      %v427 = vld [vmem:[%s421 + $0x14] sm:$0xf]
      %v428 = vld [vmem:[%s421 + $0x18] sm:$0xf]
      %v429 = vld [vmem:[%s421 + $0x1c] sm:$0xf]
      %v430 = vld [vmem:[%s421 + $0x20] sm:$0xf]
      %v431 = vld [vmem:[%s421 + $0x24] sm:$0xf]
      %v432 = vld [vmem:[%s421 + $0x28] sm:$0xf]
      %v433 = vld [vmem:[%s421 + $0x2c] sm:$0xf]
      %v434 = vld [vmem:[%s421 + $0x30] sm:$0xf]
      %v435 = vld [vmem:[%s421 + $0x34] sm:$0xf]
      %v436 = vld [vmem:[%s421 + $0x38] sm:$0xf]
      %v437 = vld [vmem:[%s421 + $0x3c] sm:$0xf]
      %v440 = vunpack.c.l.b16 %v403
      %v441 = vunpack.c.l.b16 %v420
      %v442 = vpack.c.b16 %v441, %v440
      %v444 = vshrl.u32 %v442, 16
      %v446 = vshll.u32 %v442, 16
      %v448 = vrot.slane %v446, 1
      %v449 = vor.u32 %v444, %v448
      %v467 = vunpack.c.l.b16 %v422
      %v468 = vunpack.c.l.b16 %v423
      %v469 = vunpack.c.l.b16 %v424
      %v470 = vunpack.c.l.b16 %v425
      %v471 = vunpack.c.l.b16 %v426
      %v472 = vunpack.c.l.b16 %v427
      %v473 = vunpack.c.l.b16 %v428
      %v474 = vunpack.c.l.b16 %v429
      %v475 = vunpack.c.l.b16 %v430
      %v476 = vunpack.c.l.b16 %v431
      %v477 = vunpack.c.l.b16 %v432
      %v478 = vunpack.c.l.b16 %v433
      %v479 = vunpack.c.l.b16 %v434
      %v480 = vunpack.c.l.b16 %v435
      %v481 = vunpack.c.l.b16 %v436
      %v482 = vunpack.c.l.b16 %v437
      %v483 = vpack.c.b16 %v468, %v467
      %v484 = vpack.c.b16 %v470, %v469
      %v485 = vpack.c.b16 %v472, %v471
      %v486 = vpack.c.b16 %v474, %v473
      %v487 = vpack.c.b16 %v476, %v475
      %v488 = vpack.c.b16 %v478, %v477
      %v489 = vpack.c.b16 %v480, %v479
      %v490 = vpack.c.b16 %v482, %v481
      %499 = vmatpush.bf16.msra.mxu0 %v490
      %500 = vmatpush.bf16.msra.mxu0 %v489
      %501 = vmatpush.bf16.msra.mxu0 %v488
      %502 = vmatpush.bf16.msra.mxu0 %v487
      %503 = vmatpush.bf16.msra.mxu0 %v486
      %504 = vmatpush.bf16.msra.mxu0 %v485
      %505 = vmatpush.bf16.msra.mxu0 %v484
      %506 = vmatpush.bf16.msra.mxu0 %v483
      %507 = vmatmul.bf16.gmra.mxu0 %v449
      %v508 = vpop.f32.mrf.mxu0
      %v509 = vadd.f32 0.0, %v508
      %v510 = vpop.f32.mrf.mxu0
      %511 = vdwg.mxu0
      %v528 = vunpack.c.l.b16 %v404
      %v529 = vunpack.c.l.b16 %v405
      %v530 = vunpack.c.l.b16 %v406
      %v531 = vunpack.c.l.b16 %v407
      %v532 = vunpack.c.l.b16 %v408
      %v533 = vunpack.c.l.b16 %v409
      %v534 = vunpack.c.l.b16 %v410
      %v535 = vunpack.c.l.b16 %v411
      %v536 = vunpack.c.l.b16 %v412
      %v537 = vunpack.c.l.b16 %v413
      %v538 = vunpack.c.l.b16 %v414
      %v539 = vunpack.c.l.b16 %v415
      %v540 = vunpack.c.l.b16 %v416
      %v541 = vunpack.c.l.b16 %v417
      %v542 = vunpack.c.l.b16 %v418
      %v543 = vunpack.c.l.b16 %v419
      %v544 = vpack.c.b16 %v529, %v528
      %v545 = vpack.c.b16 %v531, %v530
      %v546 = vpack.c.b16 %v533, %v532
      %v547 = vpack.c.b16 %v535, %v534
      %v548 = vpack.c.b16 %v537, %v536
      %v549 = vpack.c.b16 %v539, %v538
      %v550 = vpack.c.b16 %v541, %v540
      %v551 = vpack.c.b16 %v543, %v542
      %560 = vmatpush.bf16.msra.mxu0 %v551
      %561 = vmatpush.bf16.msra.mxu0 %v550
      %562 = vmatpush.bf16.msra.mxu0 %v549
      %563 = vmatpush.bf16.msra.mxu0 %v548
      %564 = vmatpush.bf16.msra.mxu0 %v547
      %565 = vmatpush.bf16.msra.mxu0 %v546
      %566 = vmatpush.bf16.msra.mxu0 %v545
      %567 = vmatpush.bf16.msra.mxu0 %v544
      %568 = vmatmul.bf16.gmra.mxu0 %v403
      %v569 = vpop.f32.mrf.mxu0
      %v570 = vadd.f32 %v509, %v569
      %v571 = vpop.f32.mrf.mxu0
      %572 = vdwg.mxu0
      %v573 = vld [vmem:[#allocation2] sm:$0xe]
      %s574 = scalar_lea.vmem %s3, 128
      %v575 = vld [vmem:[%s574] sm:$0xf]
      %v576 = vld [vmem:[%s574 + $0x4] sm:$0xf]
      %v577 = vld [vmem:[%s574 + $0x8] sm:$0xf]
      %v578 = vld [vmem:[%s574 + $0xc] sm:$0xf]
      %v579 = vld [vmem:[%s574 + $0x10] sm:$0xf]
      %v580 = vld [vmem:[%s574 + $0x14] sm:$0xf]
      %v581 = vld [vmem:[%s574 + $0x18] sm:$0xf]
      %v582 = vld [vmem:[%s574 + $0x1c] sm:$0xf]
      %v583 = vld [vmem:[%s574 + $0x20] sm:$0xf]
      %v584 = vld [vmem:[%s574 + $0x24] sm:$0xf]
      %v585 = vld [vmem:[%s574 + $0x28] sm:$0xf]
      %v586 = vld [vmem:[%s574 + $0x2c] sm:$0xf]
      %v587 = vld [vmem:[%s574 + $0x30] sm:$0xf]
      %v588 = vld [vmem:[%s574 + $0x34] sm:$0xf]
      %v589 = vld [vmem:[%s574 + $0x38] sm:$0xf]
      %v590 = vld [vmem:[%s574 + $0x3c] sm:$0xf]
      %v592 = vunpack.c.l.b16 %v573
      %v593 = vpack.c.b16 %v441, %v592
      %v594 = vrot.slane %v593, 1
      %v612 = vunpack.c.l.b16 %v575
      %v613 = vunpack.c.l.b16 %v576
      %v614 = vunpack.c.l.b16 %v577
      %v615 = vunpack.c.l.b16 %v578
      %v616 = vunpack.c.l.b16 %v579
      %v617 = vunpack.c.l.b16 %v580
      %v618 = vunpack.c.l.b16 %v581
      %v619 = vunpack.c.l.b16 %v582
      %v620 = vunpack.c.l.b16 %v583
      %v621 = vunpack.c.l.b16 %v584
      %v622 = vunpack.c.l.b16 %v585
      %v623 = vunpack.c.l.b16 %v586
      %v624 = vunpack.c.l.b16 %v587
      %v625 = vunpack.c.l.b16 %v588
      %v626 = vunpack.c.l.b16 %v589
      %v627 = vunpack.c.l.b16 %v590
      %v628 = vpack.c.b16 %v613, %v612
      %v629 = vpack.c.b16 %v615, %v614
      %v630 = vpack.c.b16 %v617, %v616
      %v631 = vpack.c.b16 %v619, %v618
      %v632 = vpack.c.b16 %v621, %v620
      %v633 = vpack.c.b16 %v623, %v622
      %v634 = vpack.c.b16 %v625, %v624
      %v635 = vpack.c.b16 %v627, %v626
      %644 = vmatpush.bf16.msra.mxu0 %v635
      %645 = vmatpush.bf16.msra.mxu0 %v634
      %646 = vmatpush.bf16.msra.mxu0 %v633
      %647 = vmatpush.bf16.msra.mxu0 %v632
      %648 = vmatpush.bf16.msra.mxu0 %v631
      %649 = vmatpush.bf16.msra.mxu0 %v630
      %650 = vmatpush.bf16.msra.mxu0 %v629
      %651 = vmatpush.bf16.msra.mxu0 %v628
      %652 = vmatmul.bf16.gmra.mxu0 %v594
      %v653 = vpop.f32.mrf.mxu0
      %v654 = vadd.f32 0.0, %v653
      %v655 = vpop.f32.mrf.mxu0
      %656 = vdwg.mxu0
      %v657 = vadd.f32 %v570, %v654
      %v658 = vld [vmem:[%s4] sm:$0x1]
      %v660 = vperm.slane %v658, 0
      %v662 = vadd.f32 %v657, %v660
      %v663 = vmax.f32 %v662, 0.0
      %664 = vst [vmem:[%s224] sm:$0xff] %v663
      %665 = vst [vmem:[%s224 + $0x8] sm:$0x3] 0.0
      %p666 = scmp.lt.s32.totalorder %s16, 1
      %s667 = scalar_select %p666, %s16, 1
      %s668 = smul.addr %s667, 2
      %s669 = smul.addr %s668, 8
      %s670 = scalar_lea.vmem %s5, %s669
      // Predicated region
      $region41: #{down_forward.1} parent=39 // pred_check
        %p671 = pneg %p144
      $region42: #{down_forward.1} parent=39 // pred_check_branch
        %673 = sbr.rel (%p671) target = $region44
      $region43: #{down_forward.1} parent=39 // pred_region
        _
      $region44: #{down_forward.1} parent=39 // pred_fallthru
        _
    $region40: #{down_forward.1} parent=5 // pred_fallthru
      _
    %p674 = scmp.le.s32.totalorder 2, %s11
    // Predicated region
    $region45: #{down_forward.1} parent=5 // pred_check
      %p675 = pneg %p674
    $region46: #{down_forward.1} parent=5 // pred_check_branch
      %677 = sbr.rel (%p675) target = $region48
    $region47: #{down_forward.1} parent=5 // pred_region
      %s678 = ssub.s32 %s11, 2
      // Predicated region
      $region49: #{down_forward.1} parent=47 // pred_check
        %p679 = pneg %p150
      $region50: #{down_forward.1} parent=47 // pred_check_branch
        %681 = sbr.rel (%p679) target = $region52
      $region51: #{down_forward.1} parent=47 // pred_region
        %p682 = scmp.lt.s32.totalorder %s17, 1
        %s683 = scalar_select %p682, %s17, 1
        %s684 = smul.addr %s683, 2
        %s685 = smul.addr %s684, 8
        %s686 = scalar_lea.vmem %s5, %s685
      $region52: #{down_forward.1} parent=47 // pred_fallthru
        _
    $region48: #{down_forward.1} parent=5 // pred_fallthru
      _
  $region6: #{down_forward.1} parent=0 // loop_footer
    %s15 = sadd.s32 1, %s11
  $region7: #{down_forward.1} parent=0 // loop_footer_branch
    %10 = sbr.rel target = $region3
  $region8: #{down_forward.1} parent=0 // loop_exit
    _

// kernel: down_forward.1
$region0: #{down_forward.1}
  #allocation0 [shape = 'u32[]', space=smem, size = 0x4, offset = 0x4, fixed_abs, tag = 'smem constant byte address 0x4 - core index']
  #allocation1 [shape = 'u32[72,128]{1,0:T(1,128)}', space=vmem, size = 0x9000, scoped, tag = 'internal scratch']
  #allocation2 [shape = 'f32[10,128]{1,0:T(8,128)}', space=vmem, size = 0x2000, scoped, tag = 'scratch operand']
  %s0 = inlined_call_operand.vmem [shape: f32[2,10,40], index: 0, kind: input, shape index: {}]
  %s1 = inlined_call_operand.vmem [shape: f32[3,40,128], index: 1, kind: input, shape index: {}]
  %s2 = inlined_call_operand.vmem [shape: f32[1,128], index: 2, kind: input, shape index: {}]
  %s3 = inlined_call_operand.vmem [shape: f32[3,128,128], index: 3, kind: input, shape index: {}]
  %s4 = inlined_call_operand.vmem [shape: f32[1,128], index: 4, kind: input, shape index: {}]
  %s5 = inlined_call_operand.vmem [shape: f32[2,10,128], index: 5, kind: output, shape index: {}]
  %s6 = sld [smem:[#allocation0]]
  $region53: #{down_forward.1} parent=0
    _
  %s8 = ssub.s32 1, %s6
  %s9 = scalar_select 0, %s8, %s6
  loop: start=0, step=1, limit=4
  $region2: #{down_forward.1} parent=0 // loop_pre_header
    _
  $region3: #{down_forward.1} parent=0 // loop_header
    %s11 = sphi 0, %s15
    %p12 = scmp.ge.s32.totalorder %s11, 4
    %s21 = sphi 0, %s23
    %s24 = sphi 0, %s21
    %s25 = sphi 0, %s24
    %s41 = sphi 0, %s25
    %s45 = sphi 0, %s45
    %s47 = sphi 0, %s45
    %s48 = sphi 0, %s47
    %s62 = sphi 0, %s48
    %s66 = sphi 0, %s66
    %s68 = sphi 0, %s66
    %s69 = sphi 0, %s68
    %s83 = sphi 0, %s69
    %s87 = sphi 0, %s87
    %s89 = sphi 0, %s87
    %s90 = sphi 0, %s89
    %s104 = sphi 0, %s90
    %s108 = sphi 0, %s108
    %s110 = sphi 0, %s108
    %s111 = sphi 0, %s110
    %s125 = sphi 0, %s111
    %s131 = sphi 0, %s133
    %s134 = sphi 0, %s131
    %s135 = sphi 0, %s134
    %s151 = sphi 0, %s135
  $region4: #{down_forward.1} parent=0 // loop_header_branch
    %14 = sbr.rel (%p12) target = $region8
  $region5: #{down_forward.1} parent=0 // loop_body
    %s16 = ssub.s32 %s11, 1
    %s17 = ssub.s32 %s11, 2
    %s18 = sadd.s32 %s11, 1
    %s19 = ssub.s32 %s11, %s18
    %p20 = scmp.eq.s32.totalorder %s19, 0
    %s22 = sadd.s32 %s21, 1
    %s23 = scalar_select %p20, %s21, %s22
    %p26 = pneg %p20
    %p27 = scmp.eq.s32.totalorder %s11, 1
    %p28 = por %p26, %p27
    %p29 = scmp.ne.s32.totalorder %s21, %s24
    %p30 = scmp.eq.s32.totalorder %s11, 0
    %p31 = por %p29, %p30
    %p32 = scmp.ne.s32.totalorder %s21, %s24
    %p33 = scmp.eq.s32.totalorder %s16, 1
    %p34 = por %p32, %p33
    %p35 = scmp.ne.s32.totalorder %s24, %s25
    %p36 = scmp.eq.s32.totalorder %s16, 0
    %p37 = por %p35, %p36
    %p38 = scmp.ne.s32.totalorder %s24, %s25
    %p39 = scmp.eq.s32.totalorder %s17, 1
    %p40 = por %p38, %p39
    %p42 = scmp.ne.s32.totalorder %s25, %s41
    %p43 = scmp.eq.s32.totalorder %s17, 0
    %p44 = por %p42, %p43
    %s46 = sadd.s32 %s45, 1
    %p49 = scmp.eq.s32.totalorder %s11, 1
    %p50 = scmp.ne.s32.totalorder %s45, %s47
    %p51 = scmp.eq.s32.totalorder %s11, 0
    %p52 = por %p50, %p51
    %p53 = scmp.ne.s32.totalorder %s45, %s47
    %p54 = scmp.eq.s32.totalorder %s16, 1
    %p55 = por %p53, %p54
    %p56 = scmp.ne.s32.totalorder %s47, %s48
    %p57 = scmp.eq.s32.totalorder %s16, 0
    %p58 = por %p56, %p57
    %p59 = scmp.ne.s32.totalorder %s47, %s48
    %p60 = scmp.eq.s32.totalorder %s17, 1
    %p61 = por %p59, %p60
    %p63 = scmp.ne.s32.totalorder %s48, %s62
    %p64 = scmp.eq.s32.totalorder %s17, 0
    %p65 = por %p63, %p64
    %s67 = sadd.s32 %s66, 1
    %p70 = scmp.eq.s32.totalorder %s11, 1
    %p71 = scmp.ne.s32.totalorder %s66, %s68
    %p72 = scmp.eq.s32.totalorder %s11, 0
    %p73 = por %p71, %p72
    %p74 = scmp.ne.s32.totalorder %s66, %s68
    %p75 = scmp.eq.s32.totalorder %s16, 1
    %p76 = por %p74, %p75
    %p77 = scmp.ne.s32.totalorder %s68, %s69
    %p78 = scmp.eq.s32.totalorder %s16, 0
    %p79 = por %p77, %p78
    %p80 = scmp.ne.s32.totalorder %s68, %s69
    %p81 = scmp.eq.s32.totalorder %s17, 1
    %p82 = por %p80, %p81
    %p84 = scmp.ne.s32.totalorder %s69, %s83
    %p85 = scmp.eq.s32.totalorder %s17, 0
    %p86 = por %p84, %p85
    %s88 = sadd.s32 %s87, 1
    %p91 = scmp.eq.s32.totalorder %s11, 1
    %p92 = scmp.ne.s32.totalorder %s87, %s89
    %p93 = scmp.eq.s32.totalorder %s11, 0
    %p94 = por %p92, %p93
    %p95 = scmp.ne.s32.totalorder %s87, %s89
    %p96 = scmp.eq.s32.totalorder %s16, 1
    %p97 = por %p95, %p96
    %p98 = scmp.ne.s32.totalorder %s89, %s90
    %p99 = scmp.eq.s32.totalorder %s16, 0
    %p100 = por %p98, %p99
    %p101 = scmp.ne.s32.totalorder %s89, %s90
    %p102 = scmp.eq.s32.totalorder %s17, 1
    %p103 = por %p101, %p102
    %p105 = scmp.ne.s32.totalorder %s90, %s104
    %p106 = scmp.eq.s32.totalorder %s17, 0
    %p107 = por %p105, %p106
    %s109 = sadd.s32 %s108, 1
    %p112 = scmp.eq.s32.totalorder %s11, 1
    %p113 = scmp.ne.s32.totalorder %s108, %s110
    %p114 = scmp.eq.s32.totalorder %s11, 0
    %p115 = por %p113, %p114
    %p116 = scmp.ne.s32.totalorder %s108, %s110
    %p117 = scmp.eq.s32.totalorder %s16, 1
    %p118 = por %p116, %p117
    %p119 = scmp.ne.s32.totalorder %s110, %s111
    %p120 = scmp.eq.s32.totalorder %s16, 0
    %p121 = por %p119, %p120
    %p122 = scmp.ne.s32.totalorder %s110, %s111
    %p123 = scmp.eq.s32.totalorder %s17, 1
    %p124 = por %p122, %p123
    %p126 = scmp.ne.s32.totalorder %s111, %s125
    %p127 = scmp.eq.s32.totalorder %s17, 0
    %p128 = por %p126, %p127
    %s129 = ssub.s32 %s11, %s18
    %p130 = scmp.eq.s32.totalorder %s129, 0
    %s132 = sadd.s32 %s131, 1
    %s133 = scalar_select %p130, %s131, %s132
    %p136 = pneg %p130
    %p137 = scmp.eq.s32.totalorder %s11, 1
    %p138 = por %p136, %p137
    %p139 = scmp.ne.s32.totalorder %s131, %s134
    %p140 = scmp.eq.s32.totalorder %s11, 0
    %p141 = por %p139, %p140
    %p142 = scmp.ne.s32.totalorder %s131, %s134
    %p143 = scmp.eq.s32.totalorder %s16, 1
    %p144 = por %p142, %p143
    %p145 = scmp.ne.s32.totalorder %s134, %s135
    %p146 = scmp.eq.s32.totalorder %s16, 0
    %p147 = por %p145, %p146
    %p148 = scmp.ne.s32.totalorder %s134, %s135
    %p149 = scmp.eq.s32.totalorder %s17, 1
    %p150 = por %p148, %p149
    %p152 = scmp.ne.s32.totalorder %s135, %s151
    %p153 = scmp.eq.s32.totalorder %s17, 0
    %p154 = por %p152, %p153
    %p155 = scmp.le.s32.totalorder 1, %s11
    %p156 = scmp.lt.s32.totalorder %s11, 3
    %p157 = pnand %p155, %p156
    %p158 = pneg %p157
    // Predicated region
    $region9: #{down_forward.1} parent=5 // pred_check
      _
    $region10: #{down_forward.1} parent=5 // pred_check_branch
      %160 = sbr.rel (%p157) target = $region12
    $region11: #{down_forward.1} parent=5 // pred_region
      %s161 = ssub.s32 %s11, 1
      // Predicated region
      $region13: #{down_forward.1} parent=11 // pred_check
        %p162 = pneg %p58
      $region14: #{down_forward.1} parent=11 // pred_check_branch
        %164 = sbr.rel (%p162) target = $region16
      $region15: #{down_forward.1} parent=11 // pred_region
        _
      $region16: #{down_forward.1} parent=11 // pred_fallthru
        _
      // Predicated region
      $region17: #{down_forward.1} parent=11 // pred_check
        %p165 = pneg %p79
      $region18: #{down_forward.1} parent=11 // pred_check_branch
        %167 = sbr.rel (%p165) target = $region20
      $region19: #{down_forward.1} parent=11 // pred_region
        _
      $region20: #{down_forward.1} parent=11 // pred_fallthru
        _
      // Predicated region
      $region21: #{down_forward.1} parent=11 // pred_check
        %p168 = pneg %p100
      $region22: #{down_forward.1} parent=11 // pred_check_branch
        %170 = sbr.rel (%p168) target = $region24
      $region23: #{down_forward.1} parent=11 // pred_region
        _
      $region24: #{down_forward.1} parent=11 // pred_fallthru
        _
      // Predicated region
      $region25: #{down_forward.1} parent=11 // pred_check
        %p171 = pneg %p121
      $region26: #{down_forward.1} parent=11 // pred_check_branch
        %173 = sbr.rel (%p171) target = $region28
      $region27: #{down_forward.1} parent=11 // pred_region
        _
      $region28: #{down_forward.1} parent=11 // pred_fallthru
        _
    $region12: #{down_forward.1} parent=5 // pred_fallthru
      _
    %p174 = scmp.lt.s32.totalorder %s11, 2
    // Predicated region
    $region29: #{down_forward.1} parent=5 // pred_check
      %p175 = pneg %p174
    $region30: #{down_forward.1} parent=5 // pred_check_branch
      %177 = sbr.rel (%p175) target = $region32
    $region31: #{down_forward.1} parent=5 // pred_region
      // Predicated region
      $region33: #{down_forward.1} parent=31 // pred_check
        %p178 = pneg %p31
      $region34: #{down_forward.1} parent=31 // pred_check_branch
        %180 = sbr.rel (%p178) target = $region36
      $region35: #{down_forward.1} parent=31 // pred_region
        %p181 = scmp.lt.s32.totalorder %s11, 1
        %s182 = scalar_select %p181, %s11, 1
        %s183 = smul.addr %s182, 2
        %s184 = smul.addr %s183, 8
        %s185 = scalar_lea.vmem %s0, %s184
      $region36: #{down_forward.1} parent=31 // pred_fallthru
        _
    $region32: #{down_forward.1} parent=5 // pred_fallthru
      _
    %p186 = scmp.le.s32.totalorder 1, %s11
    %p187 = scmp.lt.s32.totalorder %s11, 3
    %p188 = pnand %p186, %p187
    %p189 = pneg %p188
    // Predicated region
    $region37: #{down_forward.1} parent=5 // pred_check
      _
    $region38: #{down_forward.1} parent=5 // pred_check_branch
      %191 = sbr.rel (%p188) target = $region40
    $region39: #{down_forward.1} parent=5 // pred_region
      %s192 = ssub.s32 %s11, 1
      %p193 = scmp.lt.s32.totalorder %s16, 1
      %s194 = scalar_select %p193, %s16, 1
      %s195 = smul.addr %s194, 2
      %s196 = smul.addr %s195, 8
      %s197 = scalar_lea.vmem %s0, %s196
      %p198 = pneg %p37
      %p199 = pneg %p34
      %p200 = pneg %p58
      %p201 = pneg %p55
      %p202 = pneg %p79
      %p203 = pneg %p76
      %p204 = pneg %p100
      %p205 = pneg %p97
      %p206 = pneg %p121
      %p207 = pneg %p118
      %p208 = pneg %p147
      %p209 = pneg %p144
      %p210 = scmp.lt.s32.totalorder %s16, 1
      %s211 = scalar_select %p210, %s16, 1
      %s212 = smul.addr %s211, 2
      %s213 = smul.addr %s212, 8
      %s214 = scalar_lea.vmem %s5, %s213
      %p215 = scmp.lt.s32.totalorder %s16, 1
      %s216 = scalar_select %p215, %s16, 1
      %s217 = smul.addr %s216, 2
      %s218 = smul.addr %s217, 8
      %s219 = scalar_lea.vmem %s0, %s218
      %p220 = scmp.lt.s32.totalorder %s16, 1
      %s221 = scalar_select %p220, %s16, 1
      %s222 = smul.addr %s221, 2
      %s223 = smul.addr %s222, 8
      %s224 = scalar_lea.vmem %s5, %s223
      %v225 = vld [vmem:[%s219] sm:$0xff]
      %v226 = vld [vmem:[%s1] sm:$0xff]
      %v227 = vld [vmem:[%s1 + $0x8] sm:$0xff]
      %v228 = vld [vmem:[%s1 + $0x10] sm:$0xff]
      %v229 = vld [vmem:[%s1 + $0x18] sm:$0xff]
      %v230 = vld [vmem:[%s1 + $0x20] sm:$0xff]
      %v231 = vld [vmem:[%s219 + $0x1] sm:$0xff]
      %s232 = scalar_lea.vmem %s1, 40
      %v233 = vld [vmem:[%s232] sm:$0xff]
      %v234 = vld [vmem:[%s232 + $0x8] sm:$0xff]
      %v235 = vld [vmem:[%s232 + $0x10] sm:$0xff]
      %v236 = vld [vmem:[%s232 + $0x18] sm:$0xff]
      %v237 = vld [vmem:[%s232 + $0x20] sm:$0xff]
      %vm238 = vcmask 326656
      %v240 = vsel %vm238, %v231, 0
      %242 = vmatpush.msra.mxu0 0.0
      %243 = vmatpush.msra.mxu0 0.0
      %244 = vmatpush.msra.mxu0 0.0
      %245 = vmatpush.msra.mxu0 0.0
      %246 = vmatpush.msra.mxu0 0.0
      %247 = vmatpush.msra.mxu0 0.0
      %248 = vmatpush.msra.mxu0 0.0
      %249 = vmatpush.msra.mxu0 0.0
      %250 = vmatpush.msra.mxu0 0.0
      %251 = vmatpush.msra.mxu0 0.0
      %252 = vmatpush.msra.mxu0 0.0
      %253 = vmatpush.msra.mxu0 %v237
      %254 = vmatpush.msra.mxu0 %v236
      %255 = vmatpush.msra.mxu0 %v235
      %256 = vmatpush.msra.mxu0 %v234
      %257 = vmatpush.msra.mxu0 %v233
      %258 = vmatmul.f32.gmra.mxu0 %v240
      %v259 = vpop.f32.mrf.mxu0
      %v260 = vadd.f32 0.0, %v259
      %261 = vdwg.mxu0
      %v263 = vsel %vm238, %v225, 0
      %265 = vmatpush.msra.mxu0 0.0
      %266 = vmatpush.msra.mxu0 0.0
      %267 = vmatpush.msra.mxu0 0.0
      %268 = vmatpush.msra.mxu0 0.0
      %269 = vmatpush.msra.mxu0 0.0
      %270 = vmatpush.msra.mxu0 0.0
      %271 = vmatpush.msra.mxu0 0.0
      %272 = vmatpush.msra.mxu0 0.0
      %273 = vmatpush.msra.mxu0 0.0
      %274 = vmatpush.msra.mxu0 0.0
      %275 = vmatpush.msra.mxu0 0.0
      %276 = vmatpush.msra.mxu0 %v230
      %277 = vmatpush.msra.mxu0 %v229
      %278 = vmatpush.msra.mxu0 %v228
      %279 = vmatpush.msra.mxu0 %v227
      %280 = vmatpush.msra.mxu0 %v226
      %281 = vmatmul.f32.gmra.mxu0 %v263
      %v282 = vpop.f32.mrf.mxu0
      %v283 = vadd.f32 %v260, %v282
      %284 = vdwg.mxu0
      %v285 = vld [vmem:[%s219 + $0x2] sm:$0xff]
      %s286 = scalar_lea.vmem %s1, 80
      %v287 = vld [vmem:[%s286] sm:$0xff]
      %v288 = vld [vmem:[%s286 + $0x8] sm:$0xff]
      %v289 = vld [vmem:[%s286 + $0x10] sm:$0xff]
      %v290 = vld [vmem:[%s286 + $0x18] sm:$0xff]
      %v291 = vld [vmem:[%s286 + $0x20] sm:$0xff]
      %v293 = vsel %vm238, %v285, 0
      %295 = vmatpush.msra.mxu0 0.0
      %296 = vmatpush.msra.mxu0 0.0
      %297 = vmatpush.msra.mxu0 0.0
      %298 = vmatpush.msra.mxu0 0.0
      %299 = vmatpush.msra.mxu0 0.0
      %300 = vmatpush.msra.mxu0 0.0
      %301 = vmatpush.msra.mxu0 0.0
      %302 = vmatpush.msra.mxu0 0.0
      %303 = vmatpush.msra.mxu0 0.0
      %304 = vmatpush.msra.mxu0 0.0
      %305 = vmatpush.msra.mxu0 0.0
      %306 = vmatpush.msra.mxu0 %v291
      %307 = vmatpush.msra.mxu0 %v290
      %308 = vmatpush.msra.mxu0 %v289
      %309 = vmatpush.msra.mxu0 %v288
      %310 = vmatpush.msra.mxu0 %v287
      %311 = vmatmul.f32.gmra.mxu0 %v293
      %v312 = vpop.f32.mrf.mxu0
      %v313 = vadd.f32 0.0, %v312
      %314 = vdwg.mxu0
      %v315 = vadd.f32 %v283, %v313
      %v316 = vld [vmem:[%s2] sm:$0x1]
      %v318 = vperm.slane %v316, 0
      %v320 = vadd.f32 %v315, %v318
      %v321 = vmax.f32 %v320, 0.0
      %322 = vst [vmem:[#allocation2] sm:$0x1] 0.0
      %323 = vst [vmem:[#allocation2 + $0x9] sm:$0x1] 0.0
      %324 = vst [vmem:[#allocation2 + $0x1] sm:$0xff] %v321
      %v325 = vld [vmem:[#allocation2] sm:$0xff]
      %v326 = vld [vmem:[%s3] sm:$0xff]
      %v327 = vld [vmem:[%s3 + $0x8] sm:$0xff]
      %v328 = vld [vmem:[%s3 + $0x10] sm:$0xff]
      %v329 = vld [vmem:[%s3 + $0x18] sm:$0xff]
      %v330 = vld [vmem:[%s3 + $0x20] sm:$0xff]
      %v331 = vld [vmem:[%s3 + $0x28] sm:$0xff]
      %v332 = vld [vmem:[%s3 + $0x30] sm:$0xff]
      %v333 = vld [vmem:[%s3 + $0x38] sm:$0xff]
      %v334 = vld [vmem:[%s3 + $0x40] sm:$0xff]
      %v335 = vld [vmem:[%s3 + $0x48] sm:$0xff]
      %v336 = vld [vmem:[%s3 + $0x50] sm:$0xff]
      %v337 = vld [vmem:[%s3 + $0x58] sm:$0xff]
      %v338 = vld [vmem:[%s3 + $0x60] sm:$0xff]
      %v339 = vld [vmem:[%s3 + $0x68] sm:$0xff]
      %v340 = vld [vmem:[%s3 + $0x70] sm:$0xff]
      %v341 = vld [vmem:[%s3 + $0x78] sm:$0xff]
      %v342 = vld [vmem:[#allocation2 + $0x1] sm:$0xff]
      %s343 = scalar_lea.vmem %s3, 128
      %v344 = vld [vmem:[%s343] sm:$0xff]
      %v345 = vld [vmem:[%s343 + $0x8] sm:$0xff]
      %v346 = vld [vmem:[%s343 + $0x10] sm:$0xff]
      %v347 = vld [vmem:[%s343 + $0x18] sm:$0xff]
      %v348 = vld [vmem:[%s343 + $0x20] sm:$0xff]
      %v349 = vld [vmem:[%s343 + $0x28] sm:$0xff]
      %v350 = vld [vmem:[%s343 + $0x30] sm:$0xff]
      %v351 = vld [vmem:[%s343 + $0x38] sm:$0xff]
      %v352 = vld [vmem:[%s343 + $0x40] sm:$0xff]
      %v353 = vld [vmem:[%s343 + $0x48] sm:$0xff]
      %v354 = vld [vmem:[%s343 + $0x50] sm:$0xff]
      %v355 = vld [vmem:[%s343 + $0x58] sm:$0xff]
      %v356 = vld [vmem:[%s343 + $0x60] sm:$0xff]
      %v357 = vld [vmem:[%s343 + $0x68] sm:$0xff]
      %v358 = vld [vmem:[%s343 + $0x70] sm:$0xff]
      %v359 = vld [vmem:[%s343 + $0x78] sm:$0xff]
      %360 = vmatpush.msra.mxu0 %v359
      %361 = vmatpush.msra.mxu0 %v358
      %362 = vmatpush.msra.mxu0 %v357
      %363 = vmatpush.msra.mxu0 %v356
      %364 = vmatpush.msra.mxu0 %v355
      %365 = vmatpush.msra.mxu0 %v354
      %366 = vmatpush.msra.mxu0 %v353
      %367 = vmatpush.msra.mxu0 %v352
      %368 = vmatpush.msra.mxu0 %v351
      %369 = vmatpush.msra.mxu0 %v350
      %370 = vmatpush.msra.mxu0 %v349
      %371 = vmatpush.msra.mxu0 %v348
      %372 = vmatpush.msra.mxu0 %v347
      %373 = vmatpush.msra.mxu0 %v346
      %374 = vmatpush.msra.mxu0 %v345
      %375 = vmatpush.msra.mxu0 %v344
      %376 = vmatmul.f32.gmra.mxu0 %v342
      %v377 = vpop.f32.mrf.mxu0
      %v378 = vadd.f32 0.0, %v377
      %379 = vdwg.mxu0
      %380 = vmatpush.msra.mxu0 %v341
      %381 = vmatpush.msra.mxu0 %v340
      %382 = vmatpush.msra.mxu0 %v339
      %383 = vmatpush.msra.mxu0 %v338
      %384 = vmatpush.msra.mxu0 %v337
      %385 = vmatpush.msra.mxu0 %v336
      %386 = vmatpush.msra.mxu0 %v335
      %387 = vmatpush.msra.mxu0 %v334
      %388 = vmatpush.msra.mxu0 %v333
      %389 = vmatpush.msra.mxu0 %v332
      %390 = vmatpush.msra.mxu0 %v331
      %391 = vmatpush.msra.mxu0 %v330
      %392 = vmatpush.msra.mxu0 %v329
      %393 = vmatpush.msra.mxu0 %v328
      %394 = vmatpush.msra.mxu0 %v327
      %395 = vmatpush.msra.mxu0 %v326
      %396 = vmatmul.f32.gmra.mxu0 %v325
      %v397 = vpop.f32.mrf.mxu0
      %v398 = vadd.f32 %v378, %v397
      %399 = vdwg.mxu0
      %v400 = vld [vmem:[#allocation2 + $0x2] sm:$0xff]
      %s401 = scalar_lea.vmem %s3, 256
      %v402 = vld [vmem:[%s401] sm:$0xff]
      %v403 = vld [vmem:[%s401 + $0x8] sm:$0xff]
      %v404 = vld [vmem:[%s401 + $0x10] sm:$0xff]
      %v405 = vld [vmem:[%s401 + $0x18] sm:$0xff]
      %v406 = vld [vmem:[%s401 + $0x20] sm:$0xff]
      %v407 = vld [vmem:[%s401 + $0x28] sm:$0xff]
      %v408 = vld [vmem:[%s401 + $0x30] sm:$0xff]
      %v409 = vld [vmem:[%s401 + $0x38] sm:$0xff]
      %v410 = vld [vmem:[%s401 + $0x40] sm:$0xff]
      %v411 = vld [vmem:[%s401 + $0x48] sm:$0xff]
      %v412 = vld [vmem:[%s401 + $0x50] sm:$0xff]
      %v413 = vld [vmem:[%s401 + $0x58] sm:$0xff]
      %v414 = vld [vmem:[%s401 + $0x60] sm:$0xff]
      %v415 = vld [vmem:[%s401 + $0x68] sm:$0xff]
      %v416 = vld [vmem:[%s401 + $0x70] sm:$0xff]
      %v417 = vld [vmem:[%s401 + $0x78] sm:$0xff]
      %418 = vmatpush.msra.mxu0 %v417
      %419 = vmatpush.msra.mxu0 %v416
      %420 = vmatpush.msra.mxu0 %v415
      %421 = vmatpush.msra.mxu0 %v414
      %422 = vmatpush.msra.mxu0 %v413
      %423 = vmatpush.msra.mxu0 %v412
      %424 = vmatpush.msra.mxu0 %v411
      %425 = vmatpush.msra.mxu0 %v410
      %426 = vmatpush.msra.mxu0 %v409
      %427 = vmatpush.msra.mxu0 %v408
      %428 = vmatpush.msra.mxu0 %v407
      %429 = vmatpush.msra.mxu0 %v406
      %430 = vmatpush.msra.mxu0 %v405
      %431 = vmatpush.msra.mxu0 %v404
      %432 = vmatpush.msra.mxu0 %v403
      %433 = vmatpush.msra.mxu0 %v402
      %434 = vmatmul.f32.gmra.mxu0 %v400
      %v435 = vpop.f32.mrf.mxu0
      %v436 = vadd.f32 0.0, %v435
      %437 = vdwg.mxu0
      %v438 = vadd.f32 %v398, %v436
      %v439 = vld [vmem:[%s4] sm:$0x1]
      %v441 = vperm.slane %v439, 0
      %v443 = vadd.f32 %v438, %v441
      %v444 = vmax.f32 %v443, 0.0
      %445 = vst [vmem:[%s224] sm:$0xff] %v444
      %446 = vst [vmem:[%s224 + $0x8] sm:$0x3] 0.0
      %p447 = scmp.lt.s32.totalorder %s16, 1
      %s448 = scalar_select %p447, %s16, 1
      %s449 = smul.addr %s448, 2
      %s450 = smul.addr %s449, 8
      %s451 = scalar_lea.vmem %s5, %s450
      // Predicated region
      $region41: #{down_forward.1} parent=39 // pred_check
        %p452 = pneg %p144
      $region42: #{down_forward.1} parent=39 // pred_check_branch
        %454 = sbr.rel (%p452) target = $region44
      $region43: #{down_forward.1} parent=39 // pred_region
        _
      $region44: #{down_forward.1} parent=39 // pred_fallthru
        _
    $region40: #{down_forward.1} parent=5 // pred_fallthru
      _
    %p455 = scmp.le.s32.totalorder 2, %s11
    // Predicated region
    $region45: #{down_forward.1} parent=5 // pred_check
      %p456 = pneg %p455
    $region46: #{down_forward.1} parent=5 // pred_check_branch
      %458 = sbr.rel (%p456) target = $region48
    $region47: #{down_forward.1} parent=5 // pred_region
      %s459 = ssub.s32 %s11, 2
      // Predicated region
      $region49: #{down_forward.1} parent=47 // pred_check
        %p460 = pneg %p150
      $region50: #{down_forward.1} parent=47 // pred_check_branch
        %462 = sbr.rel (%p460) target = $region52
      $region51: #{down_forward.1} parent=47 // pred_region
        %p463 = scmp.lt.s32.totalorder %s17, 1
        %s464 = scalar_select %p463, %s17, 1
        %s465 = smul.addr %s464, 2
        %s466 = smul.addr %s465, 8
        %s467 = scalar_lea.vmem %s5, %s466
      $region52: #{down_forward.1} parent=47 // pred_fallthru
        _
    $region48: #{down_forward.1} parent=5 // pred_fallthru
      _
  $region6: #{down_forward.1} parent=0 // loop_footer
    %s15 = sadd.s32 1, %s11
  $region7: #{down_forward.1} parent=0 // loop_footer_branch
    %10 = sbr.rel target = $region3
  $region8: #{down_forward.1} parent=0 // loop_exit
    _

</llo_original>
